<compile_context>
chip_gen: v5e
topology: v5e:2x2
jax: 0.10.0
libtpu: 0.0.40
codegen_flags: <defaults>
</compile_context>

<pallas_src>
import functools

import jax
import jax.numpy as jnp
import numpy as np
from jax.experimental import pallas as pl
from jax.experimental.pallas import tpu as pltpu

NEG_SLOPE = 0.2


# -----------------------------------------------------------------------------
# Fused Forecaster kernel: deconv1 -> concat -> deconv2 -> grid_sample + 1x1.
# One grid step handles Bt batch elements; everything lives in VMEM.
# -----------------------------------------------------------------------------
def _fused_forecaster_kernel(
        p1t_ref, p2th_ref, mp_ref, w1t_ref, b1_ref, w2o_ref, w2h_ref, b2_ref,
        mask9_ref, xb_ref, yb_ref, xoff_ref, woutr_ref, bout_ref,
        o_ref, p2o_ref, flow_ref, uv_ref,
        *, m1, w1v, Hm, Wm, n_pairs, Bt, slope):
    M = Bt * m1                 # half-res pixels per grid step (lane dim)
    NC = 4 * n_pairs            # (flow-pair, sub-pixel-phase) combinations
    N = NC * M                  # stacked head columns
    P = 4 * M                   # head columns per flow pair
    Kh = Bt * Wm                # head matmul contraction dim

    def lrelu(x):
        return jnp.where(x >= 0.0, x, slope * x)

    # ---- layer 1: ConvTranspose2d(4,2,1) + LeakyReLU as ONE im2col matmul
    # (patch precomputed in the wrapper, pixels-in-lanes). ---------------------
    out1_t = jnp.dot(w1t_ref[...], p1t_ref[...],
                     preferred_element_type=jnp.float32)     # (c1, M)
    out1_t = lrelu(out1_t + b1_ref[...])
    c1 = out1_t.shape[0]

    # ---- layer 2: sub-pixel phase decomposition.  The hidden-state half of
    # the 3x3 im2col patch is a wrapper input; the out1-dependent half is
    # assembled here with static lane shifts + precomputed border masks and
    # stored as aligned 8-row blocks.  One matmul per half. --------------------
    for j in range(9):
        wy, wx = j // 3, j % 3
        d = (wy - 1) * w1v + (wx - 1)
        if d == 0:
            blk = out1_t
        else:
            # circular lane shift: blk[:, c] = out1_t[:, (c + d) mod M];
            # every wrapped / row-crossing column is zeroed by mask9.
            blk = jnp.concatenate([out1_t[:, d:], out1_t[:, :d]], axis=1)
        p2o_ref[j * c1:(j + 1) * c1, :] = blk * mask9_ref[j:j + 1, :]

    flow = (jnp.dot(w2o_ref[...], p2o_ref[...],
                    preferred_element_type=jnp.float32)
            + jnp.dot(w2h_ref[...], p2th_ref[...],
                      preferred_element_type=jnp.float32)
            + b2_ref[...])
    flow_ref[...] = lrelu(flow)                              # (2*NC, M)

    # widen: u / v values for all (pair, phase) combos along lanes; every copy
    # is a full 128-aligned row (no masked stores).
    for c in range(NC):
        uv_ref[0:1, c * M:(c + 1) * M] = flow_ref[c:c + 1, :]
        uv_ref[1:2, c * M:(c + 1) * M] = flow_ref[NC + c:NC + c + 1, :]
    u = uv_ref[0:1, :]                                       # (1, N)
    v = uv_ref[1:2, :]

    # ---- head: ALL samples in one stacked separable-bilinear matmul, fused
    # with the 1x1 output conv (wout folded into the row weights). ------------
    xoff = xoff_ref[...]
    ix = jnp.clip((xb_ref[...] + u + 1.0) * (0.5 * Wm) - 0.5, 0.0, Wm - 1.0)
    iy = jnp.clip((yb_ref[...] + v + 1.0) * (0.5 * Hm) - 0.5, 0.0, Hm - 1.0)
    x0i = ix.astype(jnp.int32)                 # trunc == floor (ix >= 0)
    wxf = ix - x0i.astype(jnp.float32)
    y0i = iy.astype(jnp.int32)
    wyf = iy - y0i.astype(jnp.float32)
    x1i = jnp.minimum(x0i + 1, Wm - 1) + xoff  # per-batch map column offset
    x0i = x0i + xoff
    y1i = jnp.minimum(y0i + 1, Hm - 1)

    colk = jax.lax.broadcasted_iota(jnp.int32, (Kh, N), 0)
    wx_m = (jnp.where(colk == x0i, 1.0 - wxf, 0.0)
            + jnp.where(colk == x1i, wxf, 0.0))              # (Kh, N)
    rowmix = jnp.dot(mp_ref[...], wx_m,
                     preferred_element_type=jnp.float32)     # (Hm, N)

    rowh = jax.lax.broadcasted_iota(jnp.int32, (Hm, N), 0)
    woutr = woutr_ref[...]
    wya = woutr * (1.0 - wyf)
    wyb = woutr * wyf
    wy_m = (jnp.where(rowh == y0i, wya, 0.0)
            + jnp.where(rowh == y1i, wyb, 0.0))              # (Hm, N)

    s = jnp.sum(wy_m * rowmix, axis=0, keepdims=True)        # (1, N)
    acc = s[:, 0:P]
    for i in range(1, n_pairs):
        acc = acc + s[:, i * P:(i + 1) * P]
    o_ref[...] = lrelu(acc + bout_ref[0])                    # (1, 4*M)


# -----------------------------------------------------------------------------
# Weight preparation (plain JAX, runs once per call, tiny).
# -----------------------------------------------------------------------------
def _conv1_weight_t(wt, k):
    """ConvTranspose2d weight (Cin, Cout, k, k) -> (Cout, k*k*Cin) for the
    stride-1 im2col matmul on the pre-dilated input (rows=oc, cols=(ky,kx,ic))."""
    cin, cout = wt.shape[0], wt.shape[1]
    w_conv = jnp.transpose(wt[:, :, ::-1, ::-1], (2, 3, 0, 1))  # (k,k,cin,cout)
    return w_conv.reshape(k * k * cin, cout).T


def _conv2_phase_weight(wt, k):
    """ConvTranspose2d(k=4,s=2,p=1) weight (Cin, Cout, 4, 4) -> phase-stacked
    (9*Cin, 4*Cout) weight for a stride-1 3x3-window im2col on the pad=1,
    un-dilated input (rows (window j, ic); columns (phase, oc))."""
    cin, cout = wt.shape[0], wt.shape[1]
    cols = []
    for py in range(2):
        for px in range(2):
            rows = []
            for wy in range(3):
                for wx in range(3):
                    ky = 3 + py - 2 * wy
                    kx = 3 + px - 2 * wx
                    if 0 <= ky < k and 0 <= kx < k:
                        rows.append(wt[:, :, ky, kx])
                    else:
                        rows.append(jnp.zeros((cin, cout), wt.dtype))
            cols.append(jnp.concatenate(rows, axis=0))          # (9*cin, cout)
    return jnp.concatenate(cols, axis=1)                        # (9*cin, 4*cout)


# -----------------------------------------------------------------------------
# Full Forecaster forward (Pallas path)
# -----------------------------------------------------------------------------
def forecaster_forward(hidden_flow, map_, params):
    k, s, p = params["k"], params["s"], params["p"]
    assert k == 4 and s == 2 and p == 1 and len(params["deconv"]) == 2
    (wt1, b1), (wt2, b2) = params["deconv"]
    wo, bo = params["out"]

    x0 = hidden_flow[0]                       # (B, c0, h0, w0)
    h1v = hidden_flow[1]                      # (B, ch1, h1, w1)
    B, c0, h0, w0 = x0.shape
    _, ch1, h1, w1 = h1v.shape
    c1 = wt1.shape[1]
    c2 = wt2.shape[1]
    assert wt2.shape[0] == ch1 + c1
    assert map_.shape[1] == 1
    Hm, Wm = map_.shape[2], map_.shape[3]
    n_pairs = c2 // 2
    m1 = h1 * w1
    NC = 4 * n_pairs

    # batch elements per grid step (amortizes per-step overhead, lane dim >=128)
    if B % 4 == 0:
        Bt = 4
    elif B % 2 == 0:
        Bt = 2
    else:
        Bt = B
    G = B // Bt
    M = Bt * m1
    N = NC * M
    Nout = 4 * M
    Kh = Bt * Wm
    f32 = jnp.float32

    # ---- layer-1 im2col patch (pixels in lanes), plain-JAX plumbing ----------
    x0_nhwc = jnp.transpose(x0, (0, 2, 3, 1)).astype(f32)
    hd, wd = (h0 - 1) * s + 1, (w0 - 1) * s + 1
    xd = jnp.zeros((B, hd, wd, c0), f32).at[:, ::s, ::s, :].set(x0_nhwc)
    pad = k - 1 - p
    x0p = jnp.pad(xd, ((0, 0), (pad, pad), (pad, pad), (0, 0)))
    patches = [x0p[:, ky:ky + h1, kx:kx + w1, :]
               for ky in range(k) for kx in range(k)]           # (B,h1,w1,c0)
    p1t = jnp.stack(patches, axis=0)                            # (k*k,B,h1,w1,c0)
    p1t = jnp.transpose(p1t, (0, 4, 1, 2, 3)).reshape(k * k * c0, B * m1)

    # ---- hidden-state half of the layer-2 3x3 im2col patch -------------------
    h1pad = jnp.pad(h1v.astype(f32), ((0, 0), (0, 0), (1, 1), (1, 1)))
    hblocks = [h1pad[:, :, wy:wy + h1, wx:wx + w1]
               for wy in range(3) for wx in range(3)]           # (B,ch1,h1,w1)
    p2th = jnp.stack(hblocks, axis=0)                           # (9,B,ch1,h1,w1)
    p2th = jnp.transpose(p2th, (0, 2, 1, 3, 4)).reshape(9 * ch1, B * m1)

    # ---- weights --------------------------------------------------------------
    w1t = _conv1_weight_t(wt1, k)                               # (c1, k*k*c0)
    b1c = b1.reshape(c1, 1).astype(f32)

    W2 = _conv2_phase_weight(wt2, k)                            # (9*(ch1+c1), 4*c2)
    perm, ocs = [], []
    for r in range(2 * NC):
        if r < NC:
            i_pair, ph = r // 4, r % 4
            oc = i_pair                                         # u channels
        else:
            i_pair, ph = (r - NC) // 4, (r - NC) % 4
            oc = n_pairs + i_pair                               # v channels
        perm.append(ph * c2 + oc)
        ocs.append(oc)
    w2t_full = W2[:, np.array(perm)].T.reshape(2 * NC, 9, ch1 + c1)
    w2h_t = w2t_full[:, :, :ch1].reshape(2 * NC, 9 * ch1)
    w2o_t = w2t_full[:, :, ch1:].reshape(2 * NC, 9 * c1)
    b2c = b2[np.array(ocs)].reshape(2 * NC, 1).astype(f32)

    wout = wo[:, :, 0, 0].reshape(n_pairs).astype(f32)
    bout = bo.reshape(1).astype(f32)

    # ---- per-step constant rows for the stacked head (numpy, static) ---------
    nn = np.arange(N)
    c_idx = nn // M
    rem = nn % M
    b_idx = rem // m1
    q_idx = rem % m1
    ph_idx = c_idx % 4
    py_i, px_i = ph_idx // 2, ph_idx % 2
    y_i, x_i = q_idx // w1, q_idx % w1
    xb_row = jnp.asarray(((2 * x_i + px_i) / w1 - 1.0).reshape(1, N).astype(np.float32))
    yb_row = jnp.asarray(((2 * y_i + py_i) / h1 - 1.0).reshape(1, N).astype(np.float32))
    xoff_row = jnp.asarray((b_idx * Wm).reshape(1, N).astype(np.int32))
    wout_row = jnp.repeat(wout, 4 * M).reshape(1, N)

    # 3x3-window validity masks on the (unpadded) half-res pixel axis
    qm = np.arange(m1)
    ym, xm = qm // w1, qm % w1
    mrows = []
    for wy in range(3):
        for wx in range(3):
            yy, xx = ym + wy - 1, xm + wx - 1
            valid = ((yy >= 0) & (yy < h1) & (xx >= 0) & (xx < w1))
            mrows.append(np.tile(valid.astype(np.float32), Bt))
    mask9 = jnp.asarray(np.stack(mrows, axis=0))                # (9, M)

    # maps: per-step batch chunk concatenated along lanes -> (G, Hm, Bt*Wm)
    mp_all = jnp.transpose(map_[:, 0].astype(f32), (1, 0, 2)).reshape(Hm, G, Bt, Wm)
    mp_all = jnp.transpose(mp_all, (1, 0, 2, 3)).reshape(G, Hm, Kh)

    kernel = functools.partial(
        _fused_forecaster_kernel,
        m1=m1, w1v=w1, Hm=Hm, Wm=Wm, n_pairs=n_pairs, Bt=Bt, slope=NEG_SLOPE)

    out_flat = pl.pallas_call(
        kernel,
        out_shape=jax.ShapeDtypeStruct((G, 1, Nout), jnp.float32),
        grid=(G,),
        in_specs=[
            pl.BlockSpec((k * k * c0, M), lambda g: (0, g)),     # p1t (layer-1 patch)
            pl.BlockSpec((9 * ch1, M), lambda g: (0, g)),        # p2t hidden half
            pl.BlockSpec((None, Hm, Kh), lambda g: (g, 0, 0)),   # maps
            pl.BlockSpec((c1, k * k * c0), lambda g: (0, 0)),    # w1t
            pl.BlockSpec((c1, 1), lambda g: (0, 0)),             # b1
            pl.BlockSpec((2 * NC, 9 * c1), lambda g: (0, 0)),    # w2 (out1 half)
            pl.BlockSpec((2 * NC, 9 * ch1), lambda g: (0, 0)),   # w2 (hidden half)
            pl.BlockSpec((2 * NC, 1), lambda g: (0, 0)),         # b2
            pl.BlockSpec((9, M), lambda g: (0, 0)),              # window masks
            pl.BlockSpec((1, N), lambda g: (0, 0)),              # x_base row
            pl.BlockSpec((1, N), lambda g: (0, 0)),              # y_base row
            pl.BlockSpec((1, N), lambda g: (0, 0)),              # batch col offset
            pl.BlockSpec((1, N), lambda g: (0, 0)),              # wout row
            pl.BlockSpec(memory_space=pltpu.MemorySpace.SMEM),   # bout scalar
        ],
        out_specs=pl.BlockSpec((None, 1, Nout), lambda g: (g, 0, 0)),
        scratch_shapes=[
            pltpu.VMEM((9 * c1, M), jnp.float32),    # out1 half of layer-2 patch
            pltpu.VMEM((2 * NC, M), jnp.float32),    # flow (channels, pixels)
            pltpu.VMEM((2, N), jnp.float32),         # widened u / v rows
        ],
        compiler_params=pltpu.CompilerParams(
            dimension_semantics=("parallel",)),
    )(p1t, p2th, mp_all, w1t, b1c, w2o_t, w2h_t, b2c,
      mask9, xb_row, yb_row, xoff_row, wout_row, bout)

    # (phase, batch, pixel) -> NCHW (wrapper layout plumbing)
    out = out_flat.reshape(G, 2, 2, Bt, h1, w1)
    out = jnp.transpose(out, (0, 3, 4, 1, 5, 2)).reshape(B, 2 * h1, 2 * w1)
    return out[:, None]


# -----------------------------------------------------------------------------
# Pure-JAX reference (no Pallas) for validation
# -----------------------------------------------------------------------------
def _ref_deconv_lrelu(x, w_t, bias, k, s, p, slope=NEG_SLOPE):
    w_conv = jnp.transpose(w_t[:, :, ::-1, ::-1], (1, 0, 2, 3))  # OIHW
    y = jax.lax.conv_general_dilated(
        x, w_conv, window_strides=(1, 1),
        padding=[(k - 1 - p, k - 1 - p)] * 2,
        lhs_dilation=(s, s),
        dimension_numbers=("NCHW", "OIHW", "NCHW"))
    y = y + bias[None, :, None, None]
    return jnp.where(y >= 0.0, y, slope * y)


def _ref_grid_sample(img, flow):
    B, link, H, W = flow.shape
    n = link // 2
    ys = (jnp.arange(H, dtype=jnp.float32) * 2.0 / H - 1.0)[:, None]
    xs = (jnp.arange(W, dtype=jnp.float32) * 2.0 / W - 1.0)[None, :]
    bidx = jnp.arange(B)[:, None, None]
    outs = []
    for i in range(n):
        gx = xs + flow[:, i]
        gy = ys + flow[:, n + i]
        ix = jnp.clip(((gx + 1.0) * W - 1.0) * 0.5, 0.0, float(W - 1))
        iy = jnp.clip(((gy + 1.0) * H - 1.0) * 0.5, 0.0, float(H - 1))
        x0f, y0f = jnp.floor(ix), jnp.floor(iy)
        wx1, wy1 = ix - x0f, iy - y0f
        x0, y0 = x0f.astype(jnp.int32), y0f.astype(jnp.int32)
        x1 = jnp.minimum(x0 + 1, W - 1)
        y1 = jnp.minimum(y0 + 1, H - 1)
        g = lambda yy, xx: img[bidx, 0, yy, xx]
        samp = ((1.0 - wy1) * (1.0 - wx1) * g(y0, x0)
                + (1.0 - wy1) * wx1 * g(y0, x1)
                + wy1 * (1.0 - wx1) * g(y1, x0)
                + wy1 * wx1 * g(y1, x1))
        outs.append(samp[:, None])
    return jnp.concatenate(outs, axis=1)


def ref_forward(hidden_flow, map_, params):
    out = None
    for i, (w, b) in enumerate(params["deconv"]):
        if i == 0:
            stack = hidden_flow[0]
        else:
            stack = jnp.concatenate([hidden_flow[i], out], axis=1)
        out = _ref_deconv_lrelu(stack, w, b, params["k"], params["s"], params["p"])
    samples = _ref_grid_sample(map_, out)
    wo, bo = params["out"]
    y = jnp.einsum("bchw,oc->bohw", samples, wo[:, :, 0, 0]) + bo[None, :, None, None]
    return jnp.where(y >= 0.0, y, NEG_SLOPE * y)


if __name__ == "__main__":
    key = jax.random.PRNGKey(0)
    ks = jax.random.split(key, 8)

    B = 2
    upsample_cin, upsample_cout = [8, 4], [8, 8]
    k, s, p = 4, 2, 1
    H0 = 4                      # hidden_flow[0] spatial size -> map is 16x16

    params = {
        "k": k, "s": s, "p": p,
        "deconv": [
            (0.1 * jax.random.normal(ks[0], (upsample_cin[0], upsample_cout[0], k, k), jnp.float32),
             0.1 * jax.random.normal(ks[1], (upsample_cout[0],), jnp.float32)),
            (0.1 * jax.random.normal(ks[2], (upsample_cin[1] + upsample_cout[0], upsample_cout[1], k, k), jnp.float32),
             0.1 * jax.random.normal(ks[3], (upsample_cout[1],), jnp.float32)),
        ],
        # CNN2D_cell(upsample_cout[-1]/2, 1, 1, 1, 0), initial_value = 2/upsample_cout[-1]
        "out": ((2.0 / upsample_cout[-1])
                * jax.random.normal(ks[4], (1, upsample_cout[-1] // 2, 1, 1), jnp.float32),
                jnp.zeros((1,), jnp.float32)),
    }

    hidden_flow = [
        jax.random.normal(ks[5], (B, upsample_cin[0], H0, H0), jnp.float32),
        jax.random.normal(ks[6], (B, upsample_cin[1], 2 * H0, 2 * H0), jnp.float32),
    ]
    map_ = jax.random.normal(ks[7], (B, 1, 4 * H0, 4 * H0), jnp.float32)

    out = forecaster_forward(hidden_flow, map_, params)
    out = jax.block_until_ready(out)
    assert out.shape == (B, 1, 4 * H0, 4 * H0), out.shape

    ref = jax.block_until_ready(ref_forward(hidden_flow, map_, params))
    max_diff = float(jnp.max(jnp.abs(out - ref)))
    if not np.isfinite(max_diff) or max_diff > 1e-2:
        raise AssertionError(f"Pallas output mismatch vs reference: max|diff|={max_diff}")

    print("KERNEL_OK")
</pallas_src>

<mosaic_0001>
module attributes {stable_mosaic.version = 11 : i64} {
  func.func @_fused_forecaster_kernel(%arg0: i32, %arg1: memref<128x128xf32, #tpu.memory_space<vmem>>, %arg2: memref<36x128xf32, #tpu.memory_space<vmem>>, %arg3: memref<1x16x32xf32, #tpu.memory_space<vmem>>, %arg4: memref<8x128xf32, #tpu.memory_space<vmem>>, %arg5: memref<8x1xf32, #tpu.memory_space<vmem>>, %arg6: memref<32x72xf32, #tpu.memory_space<vmem>>, %arg7: memref<32x36xf32, #tpu.memory_space<vmem>>, %arg8: memref<32x1xf32, #tpu.memory_space<vmem>>, %arg9: memref<9x128xf32, #tpu.memory_space<vmem>>, %arg10: memref<1x2048xf32, #tpu.memory_space<vmem>>, %arg11: memref<1x2048xf32, #tpu.memory_space<vmem>>, %arg12: memref<1x2048xi32, #tpu.memory_space<vmem>>, %arg13: memref<1x2048xf32, #tpu.memory_space<vmem>>, %arg14: memref<1xf32, #tpu.memory_space<smem>>, %arg15: memref<1x1x512xf32, #tpu.memory_space<vmem>>, %arg16: memref<72x128xf32, #tpu.memory_space<vmem>>, %arg17: memref<32x128xf32, #tpu.memory_space<vmem>>, %arg18: memref<2x2048xf32, #tpu.memory_space<vmem>>) attributes {dimension_semantics = [#tpu.dimension_semantics<parallel>], iteration_bounds = array<i64: 1>, scalar_prefetch = 0 : i64, scratch_operands = 3 : i64, tpu.core_type = #tpu.core_type<tc>, window_params = [{transform_indices = @transform_0, window_bounds = array<i64: 128, 128>}, {transform_indices = @transform_1, window_bounds = array<i64: 36, 128>}, {transform_indices = @transform_2, window_bounds = array<i64: 1, 16, 32>}, {pipeline_mode = #tpu.pipeline_mode<synchronous>, transform_indices = @transform_3, window_bounds = array<i64: 8, 128>}, {pipeline_mode = #tpu.pipeline_mode<synchronous>, transform_indices = @transform_4, window_bounds = array<i64: 8, 1>}, {pipeline_mode = #tpu.pipeline_mode<synchronous>, transform_indices = @transform_5, window_bounds = array<i64: 32, 72>}, {pipeline_mode = #tpu.pipeline_mode<synchronous>, transform_indices = @transform_6, window_bounds = array<i64: 32, 36>}, {pipeline_mode = #tpu.pipeline_mode<synchronous>, transform_indices = @transform_7, window_bounds = array<i64: 32, 1>}, {pipeline_mode = #tpu.pipeline_mode<synchronous>, transform_indices = @transform_8, window_bounds = array<i64: 9, 128>}, {pipeline_mode = #tpu.pipeline_mode<synchronous>, transform_indices = @transform_9, window_bounds = array<i64: 1, 2048>}, {pipeline_mode = #tpu.pipeline_mode<synchronous>, transform_indices = @transform_10, window_bounds = array<i64: 1, 2048>}, {pipeline_mode = #tpu.pipeline_mode<synchronous>, transform_indices = @transform_11, window_bounds = array<i64: 1, 2048>}, {pipeline_mode = #tpu.pipeline_mode<synchronous>, transform_indices = @transform_12, window_bounds = array<i64: 1, 2048>}, {transform_indices = @transform_13, window_bounds = array<i64: 1>}, {transform_indices = @transform_14, window_bounds = array<i64: 1, 1, 512>}]} {
    %c0 = arith.constant 0 : index
    %c0_0 = arith.constant 0 : index
    %0 = vector.load %arg4[%c0, %c0_0] : memref<8x128xf32, #tpu.memory_space<vmem>>, vector<8x128xf32>
    %c0_1 = arith.constant 0 : index
    %c0_2 = arith.constant 0 : index
    %1 = vector.load %arg1[%c0_1, %c0_2] : memref<128x128xf32, #tpu.memory_space<vmem>>, vector<128x128xf32>
    %cst = arith.constant dense<0.000000e+00> : vector<8x128xf32>
    %2 = tpu.matmul %0, %1, %cst {dimension_numbers = #tpu.dot_dimension_numbers<[1], [0], [0], [1], [0, 0, 1, 1], [], []>} : vector<8x128xf32>, vector<128x128xf32>, vector<8x128xf32> -> vector<8x128xf32>
    %c0_3 = arith.constant 0 : index
    %c0_4 = arith.constant 0 : index
    %3 = vector.load %arg5[%c0_3, %c0_4] : memref<8x1xf32, #tpu.memory_space<vmem>>, vector<8x1xf32>
    %4 = vector.broadcast %3 : vector<8x1xf32> to vector<8x128xf32>
    %5 = arith.addf %2, %4 : vector<8x128xf32>
    %cst_5 = arith.constant 0.000000e+00 : f32
    %6 = vector.broadcast %cst_5 : f32 to vector<8x128xf32>
    %7 = arith.cmpf oge, %5, %6 : vector<8x128xf32>
    %cst_6 = arith.constant 2.000000e-01 : f32
    %8 = vector.broadcast %cst_6 : f32 to vector<8x128xf32>
    %9 = arith.mulf %8, %5 : vector<8x128xf32>
    %10 = arith.select %7, %5, %9 : vector<8x128xi1>, vector<8x128xf32>
    %11 = vector.extract_strided_slice %10 {offsets = [0, 119], sizes = [8, 9], strides = [1, 1]} : vector<8x128xf32> to vector<8x9xf32>
    %12 = vector.extract_strided_slice %10 {offsets = [0, 0], sizes = [8, 119], strides = [1, 1]} : vector<8x128xf32> to vector<8x119xf32>
    %13 = tpu.concatenate %11, %12 in 1 : vector<8x9xf32>, vector<8x119xf32> -> vector<8x128xf32>
    %c0_7 = arith.constant 0 : index
    %c0_8 = arith.constant 0 : index
    %14 = vector.load %arg9[%c0_7, %c0_8] : memref<9x128xf32, #tpu.memory_space<vmem>>, vector<1x128xf32>
    %15 = vector.broadcast %14 : vector<1x128xf32> to vector<8x128xf32>
    %16 = arith.mulf %13, %15 : vector<8x128xf32>
    %c0_9 = arith.constant 0 : index
    %c0_10 = arith.constant 0 : index
    %17 = vector.load %arg16[%c0_9, %c0_10] : memref<72x128xf32, #tpu.memory_space<vmem>>, vector<8x128xf32>
    tpu.vector_store %arg16[%c0_9, %c0_10], %16 {strides = array<i32>} : memref<72x128xf32, #tpu.memory_space<vmem>>, vector<8x128xf32>,
    %18 = vector.extract_strided_slice %10 {offsets = [0, 120], sizes = [8, 8], strides = [1, 1]} : vector<8x128xf32> to vector<8x8xf32>
    %19 = vector.extract_strided_slice %10 {offsets = [0, 0], sizes = [8, 120], strides = [1, 1]} : vector<8x128xf32> to vector<8x120xf32>
    %20 = tpu.concatenate %18, %19 in 1 : vector<8x8xf32>, vector<8x120xf32> -> vector<8x128xf32>
    %c1 = arith.constant 1 : index
    %c0_11 = arith.constant 0 : index
    %21 = vector.load %arg9[%c1, %c0_11] : memref<9x128xf32, #tpu.memory_space<vmem>>, vector<1x128xf32>
    %22 = vector.broadcast %21 : vector<1x128xf32> to vector<8x128xf32>
    %23 = arith.mulf %20, %22 : vector<8x128xf32>
    %c8 = arith.constant 8 : index
    %c0_12 = arith.constant 0 : index
    %24 = vector.load %arg16[%c8, %c0_12] : memref<72x128xf32, #tpu.memory_space<vmem>>, vector<8x128xf32>
    tpu.vector_store %arg16[%c8, %c0_12], %23 {strides = array<i32>} : memref<72x128xf32, #tpu.memory_space<vmem>>, vector<8x128xf32>,
    %25 = vector.extract_strided_slice %10 {offsets = [0, 121], sizes = [8, 7], strides = [1, 1]} : vector<8x128xf32> to vector<8x7xf32>
    %26 = vector.extract_strided_slice %10 {offsets = [0, 0], sizes = [8, 121], strides = [1, 1]} : vector<8x128xf32> to vector<8x121xf32>
    %27 = tpu.concatenate %25, %26 in 1 : vector<8x7xf32>, vector<8x121xf32> -> vector<8x128xf32>
    %c2 = arith.constant 2 : index
    %c0_13 = arith.constant 0 : index
    %28 = vector.load %arg9[%c2, %c0_13] : memref<9x128xf32, #tpu.memory_space<vmem>>, vector<1x128xf32>
    %29 = vector.broadcast %28 : vector<1x128xf32> to vector<8x128xf32>
    %30 = arith.mulf %27, %29 : vector<8x128xf32>
    %c16 = arith.constant 16 : index
    %c0_14 = arith.constant 0 : index
    %31 = vector.load %arg16[%c16, %c0_14] : memref<72x128xf32, #tpu.memory_space<vmem>>, vector<8x128xf32>
    tpu.vector_store %arg16[%c16, %c0_14], %30 {strides = array<i32>} : memref<72x128xf32, #tpu.memory_space<vmem>>, vector<8x128xf32>,
    %32 = vector.extract_strided_slice %10 {offsets = [0, 127], sizes = [8, 1], strides = [1, 1]} : vector<8x128xf32> to vector<8x1xf32>
    %33 = vector.extract_strided_slice %10 {offsets = [0, 0], sizes = [8, 127], strides = [1, 1]} : vector<8x128xf32> to vector<8x127xf32>
    %34 = tpu.concatenate %32, %33 in 1 : vector<8x1xf32>, vector<8x127xf32> -> vector<8x128xf32>
    %c3 = arith.constant 3 : index
    %c0_15 = arith.constant 0 : index
    %35 = vector.load %arg9[%c3, %c0_15] : memref<9x128xf32, #tpu.memory_space<vmem>>, vector<1x128xf32>
    %36 = vector.broadcast %35 : vector<1x128xf32> to vector<8x128xf32>
    %37 = arith.mulf %34, %36 : vector<8x128xf32>
    %c24 = arith.constant 24 : index
    %c0_16 = arith.constant 0 : index
    %38 = vector.load %arg16[%c24, %c0_16] : memref<72x128xf32, #tpu.memory_space<vmem>>, vector<8x128xf32>
    tpu.vector_store %arg16[%c24, %c0_16], %37 {strides = array<i32>} : memref<72x128xf32, #tpu.memory_space<vmem>>, vector<8x128xf32>,
    %c4 = arith.constant 4 : index
    %c0_17 = arith.constant 0 : index
    %39 = vector.load %arg9[%c4, %c0_17] : memref<9x128xf32, #tpu.memory_space<vmem>>, vector<1x128xf32>
    %40 = vector.broadcast %39 : vector<1x128xf32> to vector<8x128xf32>
    %41 = arith.mulf %10, %40 : vector<8x128xf32>
    %c32 = arith.constant 32 : index
    %c0_18 = arith.constant 0 : index
    %42 = vector.load %arg16[%c32, %c0_18] : memref<72x128xf32, #tpu.memory_space<vmem>>, vector<8x128xf32>
    tpu.vector_store %arg16[%c32, %c0_18], %41 {strides = array<i32>} : memref<72x128xf32, #tpu.memory_space<vmem>>, vector<8x128xf32>,
    %43 = vector.extract_strided_slice %10 {offsets = [0, 1], sizes = [8, 127], strides = [1, 1]} : vector<8x128xf32> to vector<8x127xf32>
    %44 = vector.extract_strided_slice %10 {offsets = [0, 0], sizes = [8, 1], strides = [1, 1]} : vector<8x128xf32> to vector<8x1xf32>
    %45 = tpu.concatenate %43, %44 in 1 : vector<8x127xf32>, vector<8x1xf32> -> vector<8x128xf32>
    %c5 = arith.constant 5 : index
    %c0_19 = arith.constant 0 : index
    %46 = vector.load %arg9[%c5, %c0_19] : memref<9x128xf32, #tpu.memory_space<vmem>>, vector<1x128xf32>
    %47 = vector.broadcast %46 : vector<1x128xf32> to vector<8x128xf32>
    %48 = arith.mulf %45, %47 : vector<8x128xf32>
    %c40 = arith.constant 40 : index
    %c0_20 = arith.constant 0 : index
    %49 = vector.load %arg16[%c40, %c0_20] : memref<72x128xf32, #tpu.memory_space<vmem>>, vector<8x128xf32>
    tpu.vector_store %arg16[%c40, %c0_20], %48 {strides = array<i32>} : memref<72x128xf32, #tpu.memory_space<vmem>>, vector<8x128xf32>,
    %50 = vector.extract_strided_slice %10 {offsets = [0, 7], sizes = [8, 121], strides = [1, 1]} : vector<8x128xf32> to vector<8x121xf32>
    %51 = vector.extract_strided_slice %10 {offsets = [0, 0], sizes = [8, 7], strides = [1, 1]} : vector<8x128xf32> to vector<8x7xf32>
    %52 = tpu.concatenate %50, %51 in 1 : vector<8x121xf32>, vector<8x7xf32> -> vector<8x128xf32>
    %c6 = arith.constant 6 : index
    %c0_21 = arith.constant 0 : index
    %53 = vector.load %arg9[%c6, %c0_21] : memref<9x128xf32, #tpu.memory_space<vmem>>, vector<1x128xf32>
    %54 = vector.broadcast %53 : vector<1x128xf32> to vector<8x128xf32>
    %55 = arith.mulf %52, %54 : vector<8x128xf32>
    %c48 = arith.constant 48 : index
    %c0_22 = arith.constant 0 : index
    %56 = vector.load %arg16[%c48, %c0_22] : memref<72x128xf32, #tpu.memory_space<vmem>>, vector<8x128xf32>
    tpu.vector_store %arg16[%c48, %c0_22], %55 {strides = array<i32>} : memref<72x128xf32, #tpu.memory_space<vmem>>, vector<8x128xf32>,
    %57 = vector.extract_strided_slice %10 {offsets = [0, 8], sizes = [8, 120], strides = [1, 1]} : vector<8x128xf32> to vector<8x120xf32>
    %58 = vector.extract_strided_slice %10 {offsets = [0, 0], sizes = [8, 8], strides = [1, 1]} : vector<8x128xf32> to vector<8x8xf32>
    %59 = tpu.concatenate %57, %58 in 1 : vector<8x120xf32>, vector<8x8xf32> -> vector<8x128xf32>
    %c7 = arith.constant 7 : index
    %c0_23 = arith.constant 0 : index
    %60 = vector.load %arg9[%c7, %c0_23] : memref<9x128xf32, #tpu.memory_space<vmem>>, vector<1x128xf32>
    %61 = vector.broadcast %60 : vector<1x128xf32> to vector<8x128xf32>
    %62 = arith.mulf %59, %61 : vector<8x128xf32>
    %c56 = arith.constant 56 : index
    %c0_24 = arith.constant 0 : index
    %63 = vector.load %arg16[%c56, %c0_24] : memref<72x128xf32, #tpu.memory_space<vmem>>, vector<8x128xf32>
    tpu.vector_store %arg16[%c56, %c0_24], %62 {strides = array<i32>} : memref<72x128xf32, #tpu.memory_space<vmem>>, vector<8x128xf32>,
    %64 = vector.extract_strided_slice %10 {offsets = [0, 9], sizes = [8, 119], strides = [1, 1]} : vector<8x128xf32> to vector<8x119xf32>
    %65 = vector.extract_strided_slice %10 {offsets = [0, 0], sizes = [8, 9], strides = [1, 1]} : vector<8x128xf32> to vector<8x9xf32>
    %66 = tpu.concatenate %64, %65 in 1 : vector<8x119xf32>, vector<8x9xf32> -> vector<8x128xf32>
    %c8_25 = arith.constant 8 : index
    %c0_26 = arith.constant 0 : index
    %67 = vector.load %arg9[%c8_25, %c0_26] : memref<9x128xf32, #tpu.memory_space<vmem>>, vector<1x128xf32>
    %68 = vector.broadcast %67 : vector<1x128xf32> to vector<8x128xf32>
    %69 = arith.mulf %66, %68 : vector<8x128xf32>
    %c64 = arith.constant 64 : index
    %c0_27 = arith.constant 0 : index
    %70 = vector.load %arg16[%c64, %c0_27] : memref<72x128xf32, #tpu.memory_space<vmem>>, vector<8x128xf32>
    tpu.vector_store %arg16[%c64, %c0_27], %69 {strides = array<i32>} : memref<72x128xf32, #tpu.memory_space<vmem>>, vector<8x128xf32>,
    %c0_28 = arith.constant 0 : index
    %c0_29 = arith.constant 0 : index
    %71 = vector.load %arg6[%c0_28, %c0_29] : memref<32x72xf32, #tpu.memory_space<vmem>>, vector<32x72xf32>
    %c0_30 = arith.constant 0 : index
    %c0_31 = arith.constant 0 : index
    %72 = vector.load %arg16[%c0_30, %c0_31] : memref<72x128xf32, #tpu.memory_space<vmem>>, vector<72x128xf32>
    %cst_32 = arith.constant dense<0.000000e+00> : vector<32x128xf32>
    %73 = tpu.matmul %71, %72, %cst_32 {dimension_numbers = #tpu.dot_dimension_numbers<[1], [0], [0], [1], [0, 0, 1, 1], [], []>} : vector<32x72xf32>, vector<72x128xf32>, vector<32x128xf32> -> vector<32x128xf32>
    %c0_33 = arith.constant 0 : index
    %c0_34 = arith.constant 0 : index
    %74 = vector.load %arg7[%c0_33, %c0_34] : memref<32x36xf32, #tpu.memory_space<vmem>>, vector<32x36xf32>
    %c0_35 = arith.constant 0 : index
    %c0_36 = arith.constant 0 : index
    %75 = vector.load %arg2[%c0_35, %c0_36] : memref<36x128xf32, #tpu.memory_space<vmem>>, vector<36x128xf32>
    %cst_37 = arith.constant dense<0.000000e+00> : vector<32x128xf32>
    %76 = tpu.matmul %74, %75, %cst_37 {dimension_numbers = #tpu.dot_dimension_numbers<[1], [0], [0], [1], [0, 0, 1, 1], [], []>} : vector<32x36xf32>, vector<36x128xf32>, vector<32x128xf32> -> vector<32x128xf32>
    %77 = arith.addf %73, %76 : vector<32x128xf32>
    %c0_38 = arith.constant 0 : index
    %c0_39 = arith.constant 0 : index
    %78 = vector.load %arg8[%c0_38, %c0_39] : memref<32x1xf32, #tpu.memory_space<vmem>>, vector<32x1xf32>
    %79 = vector.broadcast %78 : vector<32x1xf32> to vector<32x128xf32>
    %80 = arith.addf %77, %79 : vector<32x128xf32>
    %cst_40 = arith.constant 0.000000e+00 : f32
    %81 = vector.broadcast %cst_40 : f32 to vector<32x128xf32>
    %82 = arith.cmpf oge, %80, %81 : vector<32x128xf32>
    %cst_41 = arith.constant 2.000000e-01 : f32
    %83 = vector.broadcast %cst_41 : f32 to vector<32x128xf32>
    %84 = arith.mulf %83, %80 : vector<32x128xf32>
    %85 = arith.select %82, %80, %84 : vector<32x128xi1>, vector<32x128xf32>
    %c0_42 = arith.constant 0 : index
    %c0_43 = arith.constant 0 : index
    %86 = vector.load %arg17[%c0_42, %c0_43] : memref<32x128xf32, #tpu.memory_space<vmem>>, vector<32x128xf32>
    tpu.vector_store %arg17[%c0_42, %c0_43], %85 {strides = array<i32>} : memref<32x128xf32, #tpu.memory_space<vmem>>, vector<32x128xf32>,
    %c0_44 = arith.constant 0 : index
    %c0_45 = arith.constant 0 : index
    %87 = vector.load %arg17[%c0_44, %c0_45] : memref<32x128xf32, #tpu.memory_space<vmem>>, vector<1x128xf32>
    %c0_46 = arith.constant 0 : index
    %c0_47 = arith.constant 0 : index
    %88 = vector.load %arg18[%c0_46, %c0_47] : memref<2x2048xf32, #tpu.memory_space<vmem>>, vector<1x128xf32>
    tpu.vector_store %arg18[%c0_46, %c0_47], %87 {strides = array<i32>} : memref<2x2048xf32, #tpu.memory_space<vmem>>, vector<1x128xf32>,
    %c16_48 = arith.constant 16 : index
    %c0_49 = arith.constant 0 : index
    %89 = vector.load %arg17[%c16_48, %c0_49] : memref<32x128xf32, #tpu.memory_space<vmem>>, vector<1x128xf32>
    %c1_50 = arith.constant 1 : index
    %c0_51 = arith.constant 0 : index
    %90 = vector.load %arg18[%c1_50, %c0_51] : memref<2x2048xf32, #tpu.memory_space<vmem>>, vector<1x128xf32>
    tpu.vector_store %arg18[%c1_50, %c0_51], %89 {strides = array<i32>} : memref<2x2048xf32, #tpu.memory_space<vmem>>, vector<1x128xf32>,
    %c1_52 = arith.constant 1 : index
    %c0_53 = arith.constant 0 : index
    %91 = vector.load %arg17[%c1_52, %c0_53] : memref<32x128xf32, #tpu.memory_space<vmem>>, vector<1x128xf32>
    %c0_54 = arith.constant 0 : index
    %c128 = arith.constant 128 : index
    %92 = vector.load %arg18[%c0_54, %c128] : memref<2x2048xf32, #tpu.memory_space<vmem>>, vector<1x128xf32>
    tpu.vector_store %arg18[%c0_54, %c128], %91 {strides = array<i32>} : memref<2x2048xf32, #tpu.memory_space<vmem>>, vector<1x128xf32>,
    %c17 = arith.constant 17 : index
    %c0_55 = arith.constant 0 : index
    %93 = vector.load %arg17[%c17, %c0_55] : memref<32x128xf32, #tpu.memory_space<vmem>>, vector<1x128xf32>
    %c1_56 = arith.constant 1 : index
    %c128_57 = arith.constant 128 : index
    %94 = vector.load %arg18[%c1_56, %c128_57] : memref<2x2048xf32, #tpu.memory_space<vmem>>, vector<1x128xf32>
    tpu.vector_store %arg18[%c1_56, %c128_57], %93 {strides = array<i32>} : memref<2x2048xf32, #tpu.memory_space<vmem>>, vector<1x128xf32>,
    %c2_58 = arith.constant 2 : index
    %c0_59 = arith.constant 0 : index
    %95 = vector.load %arg17[%c2_58, %c0_59] : memref<32x128xf32, #tpu.memory_space<vmem>>, vector<1x128xf32>
    %c0_60 = arith.constant 0 : index
    %c256 = arith.constant 256 : index
    %96 = vector.load %arg18[%c0_60, %c256] : memref<2x2048xf32, #tpu.memory_space<vmem>>, vector<1x128xf32>
    tpu.vector_store %arg18[%c0_60, %c256], %95 {strides = array<i32>} : memref<2x2048xf32, #tpu.memory_space<vmem>>, vector<1x128xf32>,
    %c18 = arith.constant 18 : index
    %c0_61 = arith.constant 0 : index
    %97 = vector.load %arg17[%c18, %c0_61] : memref<32x128xf32, #tpu.memory_space<vmem>>, vector<1x128xf32>
    %c1_62 = arith.constant 1 : index
    %c256_63 = arith.constant 256 : index
    %98 = vector.load %arg18[%c1_62, %c256_63] : memref<2x2048xf32, #tpu.memory_space<vmem>>, vector<1x128xf32>
    tpu.vector_store %arg18[%c1_62, %c256_63], %97 {strides = array<i32>} : memref<2x2048xf32, #tpu.memory_space<vmem>>, vector<1x128xf32>,
    %c3_64 = arith.constant 3 : index
    %c0_65 = arith.constant 0 : index
    %99 = vector.load %arg17[%c3_64, %c0_65] : memref<32x128xf32, #tpu.memory_space<vmem>>, vector<1x128xf32>
    %c0_66 = arith.constant 0 : index
    %c384 = arith.constant 384 : index
    %100 = vector.load %arg18[%c0_66, %c384] : memref<2x2048xf32, #tpu.memory_space<vmem>>, vector<1x128xf32>
    tpu.vector_store %arg18[%c0_66, %c384], %99 {strides = array<i32>} : memref<2x2048xf32, #tpu.memory_space<vmem>>, vector<1x128xf32>,
    %c19 = arith.constant 19 : index
    %c0_67 = arith.constant 0 : index
    %101 = vector.load %arg17[%c19, %c0_67] : memref<32x128xf32, #tpu.memory_space<vmem>>, vector<1x128xf32>
    %c1_68 = arith.constant 1 : index
    %c384_69 = arith.constant 384 : index
    %102 = vector.load %arg18[%c1_68, %c384_69] : memref<2x2048xf32, #tpu.memory_space<vmem>>, vector<1x128xf32>
    tpu.vector_store %arg18[%c1_68, %c384_69], %101 {strides = array<i32>} : memref<2x2048xf32, #tpu.memory_space<vmem>>, vector<1x128xf32>,
    %c4_70 = arith.constant 4 : index
    %c0_71 = arith.constant 0 : index
    %103 = vector.load %arg17[%c4_70, %c0_71] : memref<32x128xf32, #tpu.memory_space<vmem>>, vector<1x128xf32>
    %c0_72 = arith.constant 0 : index
    %c512 = arith.constant 512 : index
    %104 = vector.load %arg18[%c0_72, %c512] : memref<2x2048xf32, #tpu.memory_space<vmem>>, vector<1x128xf32>
    tpu.vector_store %arg18[%c0_72, %c512], %103 {strides = array<i32>} : memref<2x2048xf32, #tpu.memory_space<vmem>>, vector<1x128xf32>,
    %c20 = arith.constant 20 : index
    %c0_73 = arith.constant 0 : index
    %105 = vector.load %arg17[%c20, %c0_73] : memref<32x128xf32, #tpu.memory_space<vmem>>, vector<1x128xf32>
    %c1_74 = arith.constant 1 : index
    %c512_75 = arith.constant 512 : index
    %106 = vector.load %arg18[%c1_74, %c512_75] : memref<2x2048xf32, #tpu.memory_space<vmem>>, vector<1x128xf32>
    tpu.vector_store %arg18[%c1_74, %c512_75], %105 {strides = array<i32>} : memref<2x2048xf32, #tpu.memory_space<vmem>>, vector<1x128xf32>,
    %c5_76 = arith.constant 5 : index
    %c0_77 = arith.constant 0 : index
    %107 = vector.load %arg17[%c5_76, %c0_77] : memref<32x128xf32, #tpu.memory_space<vmem>>, vector<1x128xf32>
    %c0_78 = arith.constant 0 : index
    %c640 = arith.constant 640 : index
    %108 = vector.load %arg18[%c0_78, %c640] : memref<2x2048xf32, #tpu.memory_space<vmem>>, vector<1x128xf32>
    tpu.vector_store %arg18[%c0_78, %c640], %107 {strides = array<i32>} : memref<2x2048xf32, #tpu.memory_space<vmem>>, vector<1x128xf32>,
    %c21 = arith.constant 21 : index
    %c0_79 = arith.constant 0 : index
    %109 = vector.load %arg17[%c21, %c0_79] : memref<32x128xf32, #tpu.memory_space<vmem>>, vector<1x128xf32>
    %c1_80 = arith.constant 1 : index
    %c640_81 = arith.constant 640 : index
    %110 = vector.load %arg18[%c1_80, %c640_81] : memref<2x2048xf32, #tpu.memory_space<vmem>>, vector<1x128xf32>
    tpu.vector_store %arg18[%c1_80, %c640_81], %109 {strides = array<i32>} : memref<2x2048xf32, #tpu.memory_space<vmem>>, vector<1x128xf32>,
    %c6_82 = arith.constant 6 : index
    %c0_83 = arith.constant 0 : index
    %111 = vector.load %arg17[%c6_82, %c0_83] : memref<32x128xf32, #tpu.memory_space<vmem>>, vector<1x128xf32>
    %c0_84 = arith.constant 0 : index
    %c768 = arith.constant 768 : index
    %112 = vector.load %arg18[%c0_84, %c768] : memref<2x2048xf32, #tpu.memory_space<vmem>>, vector<1x128xf32>
    tpu.vector_store %arg18[%c0_84, %c768], %111 {strides = array<i32>} : memref<2x2048xf32, #tpu.memory_space<vmem>>, vector<1x128xf32>,
    %c22 = arith.constant 22 : index
    %c0_85 = arith.constant 0 : index
    %113 = vector.load %arg17[%c22, %c0_85] : memref<32x128xf32, #tpu.memory_space<vmem>>, vector<1x128xf32>
    %c1_86 = arith.constant 1 : index
    %c768_87 = arith.constant 768 : index
    %114 = vector.load %arg18[%c1_86, %c768_87] : memref<2x2048xf32, #tpu.memory_space<vmem>>, vector<1x128xf32>
    tpu.vector_store %arg18[%c1_86, %c768_87], %113 {strides = array<i32>} : memref<2x2048xf32, #tpu.memory_space<vmem>>, vector<1x128xf32>,
    %c7_88 = arith.constant 7 : index
    %c0_89 = arith.constant 0 : index
    %115 = vector.load %arg17[%c7_88, %c0_89] : memref<32x128xf32, #tpu.memory_space<vmem>>, vector<1x128xf32>
    %c0_90 = arith.constant 0 : index
    %c896 = arith.constant 896 : index
    %116 = vector.load %arg18[%c0_90, %c896] : memref<2x2048xf32, #tpu.memory_space<vmem>>, vector<1x128xf32>
    tpu.vector_store %arg18[%c0_90, %c896], %115 {strides = array<i32>} : memref<2x2048xf32, #tpu.memory_space<vmem>>, vector<1x128xf32>,
    %c23 = arith.constant 23 : index
    %c0_91 = arith.constant 0 : index
    %117 = vector.load %arg17[%c23, %c0_91] : memref<32x128xf32, #tpu.memory_space<vmem>>, vector<1x128xf32>
    %c1_92 = arith.constant 1 : index
    %c896_93 = arith.constant 896 : index
    %118 = vector.load %arg18[%c1_92, %c896_93] : memref<2x2048xf32, #tpu.memory_space<vmem>>, vector<1x128xf32>
    tpu.vector_store %arg18[%c1_92, %c896_93], %117 {strides = array<i32>} : memref<2x2048xf32, #tpu.memory_space<vmem>>, vector<1x128xf32>,
    %c8_94 = arith.constant 8 : index
    %c0_95 = arith.constant 0 : index
    %119 = vector.load %arg17[%c8_94, %c0_95] : memref<32x128xf32, #tpu.memory_space<vmem>>, vector<1x128xf32>
    %c0_96 = arith.constant 0 : index
    %c1024 = arith.constant 1024 : index
    %120 = vector.load %arg18[%c0_96, %c1024] : memref<2x2048xf32, #tpu.memory_space<vmem>>, vector<1x128xf32>
    tpu.vector_store %arg18[%c0_96, %c1024], %119 {strides = array<i32>} : memref<2x2048xf32, #tpu.memory_space<vmem>>, vector<1x128xf32>,
    %c24_97 = arith.constant 24 : index
    %c0_98 = arith.constant 0 : index
    %121 = vector.load %arg17[%c24_97, %c0_98] : memref<32x128xf32, #tpu.memory_space<vmem>>, vector<1x128xf32>
    %c1_99 = arith.constant 1 : index
    %c1024_100 = arith.constant 1024 : index
    %122 = vector.load %arg18[%c1_99, %c1024_100] : memref<2x2048xf32, #tpu.memory_space<vmem>>, vector<1x128xf32>
    tpu.vector_store %arg18[%c1_99, %c1024_100], %121 {strides = array<i32>} : memref<2x2048xf32, #tpu.memory_space<vmem>>, vector<1x128xf32>,
    %c9 = arith.constant 9 : index
    %c0_101 = arith.constant 0 : index
    %123 = vector.load %arg17[%c9, %c0_101] : memref<32x128xf32, #tpu.memory_space<vmem>>, vector<1x128xf32>
    %c0_102 = arith.constant 0 : index
    %c1152 = arith.constant 1152 : index
    %124 = vector.load %arg18[%c0_102, %c1152] : memref<2x2048xf32, #tpu.memory_space<vmem>>, vector<1x128xf32>
    tpu.vector_store %arg18[%c0_102, %c1152], %123 {strides = array<i32>} : memref<2x2048xf32, #tpu.memory_space<vmem>>, vector<1x128xf32>,
    %c25 = arith.constant 25 : index
    %c0_103 = arith.constant 0 : index
    %125 = vector.load %arg17[%c25, %c0_103] : memref<32x128xf32, #tpu.memory_space<vmem>>, vector<1x128xf32>
    %c1_104 = arith.constant 1 : index
    %c1152_105 = arith.constant 1152 : index
    %126 = vector.load %arg18[%c1_104, %c1152_105] : memref<2x2048xf32, #tpu.memory_space<vmem>>, vector<1x128xf32>
    tpu.vector_store %arg18[%c1_104, %c1152_105], %125 {strides = array<i32>} : memref<2x2048xf32, #tpu.memory_space<vmem>>, vector<1x128xf32>,
    %c10 = arith.constant 10 : index
    %c0_106 = arith.constant 0 : index
    %127 = vector.load %arg17[%c10, %c0_106] : memref<32x128xf32, #tpu.memory_space<vmem>>, vector<1x128xf32>
    %c0_107 = arith.constant 0 : index
    %c1280 = arith.constant 1280 : index
    %128 = vector.load %arg18[%c0_107, %c1280] : memref<2x2048xf32, #tpu.memory_space<vmem>>, vector<1x128xf32>
    tpu.vector_store %arg18[%c0_107, %c1280], %127 {strides = array<i32>} : memref<2x2048xf32, #tpu.memory_space<vmem>>, vector<1x128xf32>,
    %c26 = arith.constant 26 : index
    %c0_108 = arith.constant 0 : index
    %129 = vector.load %arg17[%c26, %c0_108] : memref<32x128xf32, #tpu.memory_space<vmem>>, vector<1x128xf32>
    %c1_109 = arith.constant 1 : index
    %c1280_110 = arith.constant 1280 : index
    %130 = vector.load %arg18[%c1_109, %c1280_110] : memref<2x2048xf32, #tpu.memory_space<vmem>>, vector<1x128xf32>
    tpu.vector_store %arg18[%c1_109, %c1280_110], %129 {strides = array<i32>} : memref<2x2048xf32, #tpu.memory_space<vmem>>, vector<1x128xf32>,
    %c11 = arith.constant 11 : index
    %c0_111 = arith.constant 0 : index
    %131 = vector.load %arg17[%c11, %c0_111] : memref<32x128xf32, #tpu.memory_space<vmem>>, vector<1x128xf32>
    %c0_112 = arith.constant 0 : index
    %c1408 = arith.constant 1408 : index
    %132 = vector.load %arg18[%c0_112, %c1408] : memref<2x2048xf32, #tpu.memory_space<vmem>>, vector<1x128xf32>
    tpu.vector_store %arg18[%c0_112, %c1408], %131 {strides = array<i32>} : memref<2x2048xf32, #tpu.memory_space<vmem>>, vector<1x128xf32>,
    %c27 = arith.constant 27 : index
    %c0_113 = arith.constant 0 : index
    %133 = vector.load %arg17[%c27, %c0_113] : memref<32x128xf32, #tpu.memory_space<vmem>>, vector<1x128xf32>
    %c1_114 = arith.constant 1 : index
    %c1408_115 = arith.constant 1408 : index
    %134 = vector.load %arg18[%c1_114, %c1408_115] : memref<2x2048xf32, #tpu.memory_space<vmem>>, vector<1x128xf32>
    tpu.vector_store %arg18[%c1_114, %c1408_115], %133 {strides = array<i32>} : memref<2x2048xf32, #tpu.memory_space<vmem>>, vector<1x128xf32>,
    %c12 = arith.constant 12 : index
    %c0_116 = arith.constant 0 : index
    %135 = vector.load %arg17[%c12, %c0_116] : memref<32x128xf32, #tpu.memory_space<vmem>>, vector<1x128xf32>
    %c0_117 = arith.constant 0 : index
    %c1536 = arith.constant 1536 : index
    %136 = vector.load %arg18[%c0_117, %c1536] : memref<2x2048xf32, #tpu.memory_space<vmem>>, vector<1x128xf32>
    tpu.vector_store %arg18[%c0_117, %c1536], %135 {strides = array<i32>} : memref<2x2048xf32, #tpu.memory_space<vmem>>, vector<1x128xf32>,
    %c28 = arith.constant 28 : index
    %c0_118 = arith.constant 0 : index
    %137 = vector.load %arg17[%c28, %c0_118] : memref<32x128xf32, #tpu.memory_space<vmem>>, vector<1x128xf32>
    %c1_119 = arith.constant 1 : index
    %c1536_120 = arith.constant 1536 : index
    %138 = vector.load %arg18[%c1_119, %c1536_120] : memref<2x2048xf32, #tpu.memory_space<vmem>>, vector<1x128xf32>
    tpu.vector_store %arg18[%c1_119, %c1536_120], %137 {strides = array<i32>} : memref<2x2048xf32, #tpu.memory_space<vmem>>, vector<1x128xf32>,
    %c13 = arith.constant 13 : index
    %c0_121 = arith.constant 0 : index
    %139 = vector.load %arg17[%c13, %c0_121] : memref<32x128xf32, #tpu.memory_space<vmem>>, vector<1x128xf32>
    %c0_122 = arith.constant 0 : index
    %c1664 = arith.constant 1664 : index
    %140 = vector.load %arg18[%c0_122, %c1664] : memref<2x2048xf32, #tpu.memory_space<vmem>>, vector<1x128xf32>
    tpu.vector_store %arg18[%c0_122, %c1664], %139 {strides = array<i32>} : memref<2x2048xf32, #tpu.memory_space<vmem>>, vector<1x128xf32>,
    %c29 = arith.constant 29 : index
    %c0_123 = arith.constant 0 : index
    %141 = vector.load %arg17[%c29, %c0_123] : memref<32x128xf32, #tpu.memory_space<vmem>>, vector<1x128xf32>
    %c1_124 = arith.constant 1 : index
    %c1664_125 = arith.constant 1664 : index
    %142 = vector.load %arg18[%c1_124, %c1664_125] : memref<2x2048xf32, #tpu.memory_space<vmem>>, vector<1x128xf32>
    tpu.vector_store %arg18[%c1_124, %c1664_125], %141 {strides = array<i32>} : memref<2x2048xf32, #tpu.memory_space<vmem>>, vector<1x128xf32>,
    %c14 = arith.constant 14 : index
    %c0_126 = arith.constant 0 : index
    %143 = vector.load %arg17[%c14, %c0_126] : memref<32x128xf32, #tpu.memory_space<vmem>>, vector<1x128xf32>
    %c0_127 = arith.constant 0 : index
    %c1792 = arith.constant 1792 : index
    %144 = vector.load %arg18[%c0_127, %c1792] : memref<2x2048xf32, #tpu.memory_space<vmem>>, vector<1x128xf32>
    tpu.vector_store %arg18[%c0_127, %c1792], %143 {strides = array<i32>} : memref<2x2048xf32, #tpu.memory_space<vmem>>, vector<1x128xf32>,
    %c30 = arith.constant 30 : index
    %c0_128 = arith.constant 0 : index
    %145 = vector.load %arg17[%c30, %c0_128] : memref<32x128xf32, #tpu.memory_space<vmem>>, vector<1x128xf32>
    %c1_129 = arith.constant 1 : index
    %c1792_130 = arith.constant 1792 : index
    %146 = vector.load %arg18[%c1_129, %c1792_130] : memref<2x2048xf32, #tpu.memory_space<vmem>>, vector<1x128xf32>
    tpu.vector_store %arg18[%c1_129, %c1792_130], %145 {strides = array<i32>} : memref<2x2048xf32, #tpu.memory_space<vmem>>, vector<1x128xf32>,
    %c15 = arith.constant 15 : index
    %c0_131 = arith.constant 0 : index
    %147 = vector.load %arg17[%c15, %c0_131] : memref<32x128xf32, #tpu.memory_space<vmem>>, vector<1x128xf32>
    %c0_132 = arith.constant 0 : index
    %c1920 = arith.constant 1920 : index
    %148 = vector.load %arg18[%c0_132, %c1920] : memref<2x2048xf32, #tpu.memory_space<vmem>>, vector<1x128xf32>
    tpu.vector_store %arg18[%c0_132, %c1920], %147 {strides = array<i32>} : memref<2x2048xf32, #tpu.memory_space<vmem>>, vector<1x128xf32>,
    %c31 = arith.constant 31 : index
    %c0_133 = arith.constant 0 : index
    %149 = vector.load %arg17[%c31, %c0_133] : memref<32x128xf32, #tpu.memory_space<vmem>>, vector<1x128xf32>
    %c1_134 = arith.constant 1 : index
    %c1920_135 = arith.constant 1920 : index
    %150 = vector.load %arg18[%c1_134, %c1920_135] : memref<2x2048xf32, #tpu.memory_space<vmem>>, vector<1x128xf32>
    tpu.vector_store %arg18[%c1_134, %c1920_135], %149 {strides = array<i32>} : memref<2x2048xf32, #tpu.memory_space<vmem>>, vector<1x128xf32>,
    %c0_136 = arith.constant 0 : index
    %c0_137 = arith.constant 0 : index
    %151 = vector.load %arg18[%c0_136, %c0_137] : memref<2x2048xf32, #tpu.memory_space<vmem>>, vector<1x2048xf32>
    %c1_138 = arith.constant 1 : index
    %c0_139 = arith.constant 0 : index
    %152 = vector.load %arg18[%c1_138, %c0_139] : memref<2x2048xf32, #tpu.memory_space<vmem>>, vector<1x2048xf32>
    %c0_140 = arith.constant 0 : index
    %c0_141 = arith.constant 0 : index
    %153 = vector.load %arg12[%c0_140, %c0_141] : memref<1x2048xi32, #tpu.memory_space<vmem>>, vector<1x2048xi32>
    %c0_142 = arith.constant 0 : index
    %c0_143 = arith.constant 0 : index
    %154 = vector.load %arg10[%c0_142, %c0_143] : memref<1x2048xf32, #tpu.memory_space<vmem>>, vector<1x2048xf32>
    %155 = arith.addf %154, %151 : vector<1x2048xf32>
    %cst_144 = arith.constant 1.000000e+00 : f32
    %156 = vector.broadcast %cst_144 : f32 to vector<1x2048xf32>
    %157 = arith.addf %155, %156 : vector<1x2048xf32>
    %cst_145 = arith.constant 8.000000e+00 : f32
    %158 = vector.broadcast %cst_145 : f32 to vector<1x2048xf32>
    %159 = arith.mulf %157, %158 : vector<1x2048xf32>
    %cst_146 = arith.constant 5.000000e-01 : f32
    %160 = vector.broadcast %cst_146 : f32 to vector<1x2048xf32>
    %161 = arith.subf %159, %160 : vector<1x2048xf32>
    %cst_147 = arith.constant 0.000000e+00 : f32
    %cst_148 = arith.constant 1.500000e+01 : f32
    %162 = vector.broadcast %cst_147 : f32 to vector<1x2048xf32>
    %163 = arith.maximumf %162, %161 : vector<1x2048xf32>
    %164 = vector.broadcast %cst_148 : f32 to vector<1x2048xf32>
    %165 = arith.minimumf %164, %163 : vector<1x2048xf32>
    %c0_149 = arith.constant 0 : index
    %c0_150 = arith.constant 0 : index
    %166 = vector.load %arg11[%c0_149, %c0_150] : memref<1x2048xf32, #tpu.memory_space<vmem>>, vector<1x2048xf32>
    %167 = arith.addf %166, %152 : vector<1x2048xf32>
    %cst_151 = arith.constant 1.000000e+00 : f32
    %168 = vector.broadcast %cst_151 : f32 to vector<1x2048xf32>
    %169 = arith.addf %167, %168 : vector<1x2048xf32>
    %cst_152 = arith.constant 8.000000e+00 : f32
    %170 = vector.broadcast %cst_152 : f32 to vector<1x2048xf32>
    %171 = arith.mulf %169, %170 : vector<1x2048xf32>
    %cst_153 = arith.constant 5.000000e-01 : f32
    %172 = vector.broadcast %cst_153 : f32 to vector<1x2048xf32>
    %173 = arith.subf %171, %172 : vector<1x2048xf32>
    %cst_154 = arith.constant 0.000000e+00 : f32
    %cst_155 = arith.constant 1.500000e+01 : f32
    %174 = vector.broadcast %cst_154 : f32 to vector<1x2048xf32>
    %175 = arith.maximumf %174, %173 : vector<1x2048xf32>
    %176 = vector.broadcast %cst_155 : f32 to vector<1x2048xf32>
    %177 = arith.minimumf %176, %175 : vector<1x2048xf32>
    %178 = arith.fptosi %165 : vector<1x2048xf32> to vector<1x2048xi32>
    %179 = arith.sitofp %178 : vector<1x2048xi32> to vector<1x2048xf32>
    %180 = arith.subf %165, %179 : vector<1x2048xf32>
    %181 = arith.fptosi %177 : vector<1x2048xf32> to vector<1x2048xi32>
    %182 = arith.sitofp %181 : vector<1x2048xi32> to vector<1x2048xf32>
    %183 = arith.subf %177, %182 : vector<1x2048xf32>
    %c1_i32 = arith.constant 1 : i32
    %184 = vector.broadcast %c1_i32 : i32 to vector<1x2048xi32>
    %185 = arith.addi %178, %184 : vector<1x2048xi32>
    %c15_i32 = arith.constant 15 : i32
    %186 = vector.broadcast %c15_i32 : i32 to vector<1x2048xi32>
    %187 = arith.minsi %185, %186 : vector<1x2048xi32>
    %188 = arith.addi %187, %153 : vector<1x2048xi32>
    %189 = arith.addi %178, %153 : vector<1x2048xi32>
    %c1_i32_156 = arith.constant 1 : i32
    %190 = vector.broadcast %c1_i32_156 : i32 to vector<1x2048xi32>
    %191 = arith.addi %181, %190 : vector<1x2048xi32>
    %c15_i32_157 = arith.constant 15 : i32
    %192 = vector.broadcast %c15_i32_157 : i32 to vector<1x2048xi32>
    %193 = arith.minsi %191, %192 : vector<1x2048xi32>
    %194 = tpu.iota {dimensions = array<i32: 0>} : vector<32x2048xi32>
    %195 = vector.broadcast %189 : vector<1x2048xi32> to vector<32x2048xi32>
    %196 = arith.cmpi eq, %194, %195 : vector<32x2048xi32>
    %cst_158 = arith.constant 1.000000e+00 : f32
    %197 = vector.broadcast %cst_158 : f32 to vector<1x2048xf32>
    %198 = arith.subf %197, %180 : vector<1x2048xf32>
    %cst_159 = arith.constant 0.000000e+00 : f32
    %199 = vector.shape_cast %198 : vector<1x2048xf32> to vector<1x2048xf32>
    %200 = vector.broadcast %199 : vector<1x2048xf32> to vector<32x2048xf32>
    %201 = vector.broadcast %cst_159 : f32 to vector<32x2048xf32>
    %202 = arith.select %196, %200, %201 : vector<32x2048xi1>, vector<32x2048xf32>
    %203 = vector.broadcast %188 : vector<1x2048xi32> to vector<32x2048xi32>
    %204 = arith.cmpi eq, %194, %203 : vector<32x2048xi32>
    %cst_160 = arith.constant 0.000000e+00 : f32
    %205 = vector.shape_cast %180 : vector<1x2048xf32> to vector<1x2048xf32>
    %206 = vector.broadcast %205 : vector<1x2048xf32> to vector<32x2048xf32>
    %207 = vector.broadcast %cst_160 : f32 to vector<32x2048xf32>
    %208 = arith.select %204, %206, %207 : vector<32x2048xi1>, vector<32x2048xf32>
    %209 = arith.addf %202, %208 : vector<32x2048xf32>
    %c0_161 = arith.constant 0 : index
    %c0_162 = arith.constant 0 : index
    %c0_163 = arith.constant 0 : index
    %210 = vector.load %arg3[%c0_161, %c0_162, %c0_163] : memref<1x16x32xf32, #tpu.memory_space<vmem>>, vector<1x16x32xf32>
    %211 = vector.shape_cast %210 : vector<1x16x32xf32> to vector<16x32xf32>
    %cst_164 = arith.constant dense<0.000000e+00> : vector<16x2048xf32>
    %212 = tpu.matmul %211, %209, %cst_164 {dimension_numbers = #tpu.dot_dimension_numbers<[1], [0], [0], [1], [0, 0, 1, 1], [], []>} : vector<16x32xf32>, vector<32x2048xf32>, vector<16x2048xf32> -> vector<16x2048xf32>
    %213 = tpu.iota {dimensions = array<i32: 0>} : vector<16x2048xi32>
    %c0_165 = arith.constant 0 : index
    %c0_166 = arith.constant 0 : index
    %214 = vector.load %arg13[%c0_165, %c0_166] : memref<1x2048xf32, #tpu.memory_space<vmem>>, vector<1x2048xf32>
    %cst_167 = arith.constant 1.000000e+00 : f32
    %215 = vector.broadcast %cst_167 : f32 to vector<1x2048xf32>
    %216 = arith.subf %215, %183 : vector<1x2048xf32>
    %217 = arith.mulf %214, %216 : vector<1x2048xf32>
    %218 = arith.mulf %214, %183 : vector<1x2048xf32>
    %219 = vector.broadcast %181 : vector<1x2048xi32> to vector<16x2048xi32>
    %220 = arith.cmpi eq, %213, %219 : vector<16x2048xi32>
    %cst_168 = arith.constant 0.000000e+00 : f32
    %221 = vector.shape_cast %217 : vector<1x2048xf32> to vector<1x2048xf32>
    %222 = vector.broadcast %221 : vector<1x2048xf32> to vector<16x2048xf32>
    %223 = vector.broadcast %cst_168 : f32 to vector<16x2048xf32>
    %224 = arith.select %220, %222, %223 : vector<16x2048xi1>, vector<16x2048xf32>
    %225 = vector.broadcast %193 : vector<1x2048xi32> to vector<16x2048xi32>
    %226 = arith.cmpi eq, %213, %225 : vector<16x2048xi32>
    %cst_169 = arith.constant 0.000000e+00 : f32
    %227 = vector.shape_cast %218 : vector<1x2048xf32> to vector<1x2048xf32>
    %228 = vector.broadcast %227 : vector<1x2048xf32> to vector<16x2048xf32>
    %229 = vector.broadcast %cst_169 : f32 to vector<16x2048xf32>
    %230 = arith.select %226, %228, %229 : vector<16x2048xi1>, vector<16x2048xf32>
    %231 = arith.addf %224, %230 : vector<16x2048xf32>
    %232 = arith.mulf %231, %212 : vector<16x2048xf32>
    %cst_170 = arith.constant dense<0.000000e+00> : vector<2048xf32>
    %233 = vector.multi_reduction <add>, %232, %cst_170 [0] : vector<16x2048xf32> to vector<2048xf32>
    %234 = vector.shape_cast %233 : vector<2048xf32> to vector<1x2048xf32>
    %235 = vector.extract_strided_slice %234 {offsets = [0, 0], sizes = [1, 512], strides = [1, 1]} : vector<1x2048xf32> to vector<1x512xf32>
    %236 = vector.extract_strided_slice %234 {offsets = [0, 512], sizes = [1, 512], strides = [1, 1]} : vector<1x2048xf32> to vector<1x512xf32>
    %237 = arith.addf %235, %236 : vector<1x512xf32>
    %238 = vector.extract_strided_slice %234 {offsets = [0, 1024], sizes = [1, 512], strides = [1, 1]} : vector<1x2048xf32> to vector<1x512xf32>
    %239 = arith.addf %237, %238 : vector<1x512xf32>
    %240 = vector.extract_strided_slice %234 {offsets = [0, 1536], sizes = [1, 512], strides = [1, 1]} : vector<1x2048xf32> to vector<1x512xf32>
    %241 = arith.addf %239, %240 : vector<1x512xf32>
    %c0_171 = arith.constant 0 : index
    %242 = memref.load %arg14[%c0_171] : memref<1xf32, #tpu.memory_space<smem>>
    %243 = vector.broadcast %242 : f32 to vector<1x512xf32>
    %244 = arith.addf %241, %243 : vector<1x512xf32>
    %cst_172 = arith.constant 0.000000e+00 : f32
    %245 = vector.broadcast %cst_172 : f32 to vector<1x512xf32>
    %246 = arith.cmpf oge, %244, %245 : vector<1x512xf32>
    %cst_173 = arith.constant 2.000000e-01 : f32
    %247 = vector.broadcast %cst_173 : f32 to vector<1x512xf32>
    %248 = arith.mulf %247, %244 : vector<1x512xf32>
    %249 = arith.select %246, %244, %248 : vector<1x512xi1>, vector<1x512xf32>
    %c0_174 = arith.constant 0 : index
    %c0_175 = arith.constant 0 : index
    %c0_176 = arith.constant 0 : index
    %250 = vector.load %arg15[%c0_174, %c0_175, %c0_176] : memref<1x1x512xf32, #tpu.memory_space<vmem>>, vector<1x1x512xf32>
    %251 = vector.shape_cast %250 : vector<1x1x512xf32> to vector<1x512xf32>
    %252 = vector.shape_cast %249 : vector<1x512xf32> to vector<1x1x512xf32>
    tpu.vector_store %arg15[%c0_174, %c0_175, %c0_176], %252 {strides = array<i32>} : memref<1x1x512xf32, #tpu.memory_space<vmem>>, vector<1x1x512xf32>,
    return
  }
  func.func @transform_0(%arg0: i32) -> (i32, i32) {
    %c0_i32 = arith.constant 0 : i32
    %c0_i32_0 = arith.constant 0 : i32
    return %c0_i32, %arg0 : i32, i32
  }
  func.func @transform_1(%arg0: i32) -> (i32, i32) {
    %c0_i32 = arith.constant 0 : i32
    %c0_i32_0 = arith.constant 0 : i32
    return %c0_i32, %arg0 : i32, i32
  }
  func.func @transform_2(%arg0: i32) -> (i32, i32, i32) {
    %c0_i32 = arith.constant 0 : i32
    %c0_i32_0 = arith.constant 0 : i32
    %c0_i32_1 = arith.constant 0 : i32
    return %arg0, %c0_i32, %c0_i32_0 : i32, i32, i32
  }
  func.func @transform_3(%arg0: i32) -> (i32, i32) {
    %c0_i32 = arith.constant 0 : i32
    %c0_i32_0 = arith.constant 0 : i32
    %c0_i32_1 = arith.constant 0 : i32
    return %c0_i32, %c0_i32_0 : i32, i32
  }
  func.func @transform_4(%arg0: i32) -> (i32, i32) {
    %c0_i32 = arith.constant 0 : i32
    %c0_i32_0 = arith.constant 0 : i32
    %c0_i32_1 = arith.constant 0 : i32
    return %c0_i32, %c0_i32_0 : i32, i32
  }
  func.func @transform_5(%arg0: i32) -> (i32, i32) {
    %c0_i32 = arith.constant 0 : i32
    %c0_i32_0 = arith.constant 0 : i32
    %c0_i32_1 = arith.constant 0 : i32
    return %c0_i32, %c0_i32_0 : i32, i32
  }
  func.func @transform_6(%arg0: i32) -> (i32, i32) {
    %c0_i32 = arith.constant 0 : i32
    %c0_i32_0 = arith.constant 0 : i32
    %c0_i32_1 = arith.constant 0 : i32
    return %c0_i32, %c0_i32_0 : i32, i32
  }
  func.func @transform_7(%arg0: i32) -> (i32, i32) {
    %c0_i32 = arith.constant 0 : i32
    %c0_i32_0 = arith.constant 0 : i32
    %c0_i32_1 = arith.constant 0 : i32
    return %c0_i32, %c0_i32_0 : i32, i32
  }
  func.func @transform_8(%arg0: i32) -> (i32, i32) {
    %c0_i32 = arith.constant 0 : i32
    %c0_i32_0 = arith.constant 0 : i32
    %c0_i32_1 = arith.constant 0 : i32
    return %c0_i32, %c0_i32_0 : i32, i32
  }
  func.func @transform_9(%arg0: i32) -> (i32, i32) {
    %c0_i32 = arith.constant 0 : i32
    %c0_i32_0 = arith.constant 0 : i32
    %c0_i32_1 = arith.constant 0 : i32
    return %c0_i32, %c0_i32_0 : i32, i32
  }
  func.func @transform_10(%arg0: i32) -> (i32, i32) {
    %c0_i32 = arith.constant 0 : i32
    %c0_i32_0 = arith.constant 0 : i32
    %c0_i32_1 = arith.constant 0 : i32
    return %c0_i32, %c0_i32_0 : i32, i32
  }
  func.func @transform_11(%arg0: i32) -> (i32, i32) {
    %c0_i32 = arith.constant 0 : i32
    %c0_i32_0 = arith.constant 0 : i32
    %c0_i32_1 = arith.constant 0 : i32
    return %c0_i32, %c0_i32_0 : i32, i32
  }
  func.func @transform_12(%arg0: i32) -> (i32, i32) {
    %c0_i32 = arith.constant 0 : i32
    %c0_i32_0 = arith.constant 0 : i32
    %c0_i32_1 = arith.constant 0 : i32
    return %c0_i32, %c0_i32_0 : i32, i32
  }
  func.func @transform_13(%arg0: i32) -> i32 {
    %c0_i32 = arith.constant 0 : i32
    %c0_i32_0 = arith.constant 0 : i32
    return %c0_i32 : i32
  }
  func.func @transform_14(%arg0: i32) -> (i32, i32, i32) {
    %c0_i32 = arith.constant 0 : i32
    %c0_i32_0 = arith.constant 0 : i32
    %c0_i32_1 = arith.constant 0 : i32
    return %arg0, %c0_i32, %c0_i32_0 : i32, i32, i32
  }
}

</mosaic_0001>

<llo_original>
// kernel: tpu_custom_call.1
$region0: #{tpu_custom_call.1}
  #allocation0 [shape = 'u32[]', space=smem, size = 0x4, offset = 0x4, fixed_abs, tag = 'smem constant byte address 0x4 - core index']
  #allocation1 [shape = 'u32[72,128]{1,0:T(1,128)}', space=vmem, size = 0x9000, scoped, tag = 'internal scratch']
  #allocation2 [shape = 'f32[72,128]{1,0:T(8,128)}', space=vmem, size = 0x9000, scoped, tag = 'scratch operand']
  #allocation3 [shape = 'f32[32,128]{1,0:T(8,128)}', space=vmem, size = 0x4000, scoped, tag = 'scratch operand']
  #allocation4 [shape = 'f32[2,2048]{1,0:T(2,128)}', space=vmem, size = 0x4000, scoped, tag = 'scratch operand']
  #allocation5 [shape = 'f32[1]{0:T(128)S(6)}', space=smem, size = 0x200, scoped, tag = 'scoped memory for tpu_custom_call.1']
  %s0 = inlined_call_operand.hbm [shape: f32[128,128], index: 0, kind: input, shape index: {}]
  %s1 = inlined_call_operand.vmem [shape: f32[36,128], index: 1, kind: input, shape index: {}]
  %s2 = inlined_call_operand.hbm [shape: f32[1,16,32], index: 2, kind: input, shape index: {}]
  %s3 = inlined_call_operand.hbm [shape: f32[8,128], index: 3, kind: input, shape index: {}]
  %s4 = inlined_call_operand.vmem [shape: f32[8,1], index: 4, kind: input, shape index: {}]
  %s5 = inlined_call_operand.hbm [shape: f32[32,72], index: 5, kind: input, shape index: {}]
  %s6 = inlined_call_operand.hbm [shape: f32[32,36], index: 6, kind: input, shape index: {}]
  %s7 = inlined_call_operand.vmem [shape: f32[32,1], index: 7, kind: input, shape index: {}]
  %s8 = inlined_call_operand.hbm [shape: f32[9,128], index: 8, kind: input, shape index: {}]
  %s9 = inlined_call_operand.hbm [shape: f32[1,2048], index: 9, kind: input, shape index: {}]
  %s10 = inlined_call_operand.hbm [shape: f32[1,2048], index: 10, kind: input, shape index: {}]
  %s11 = inlined_call_operand.hbm [shape: s32[1,2048], index: 11, kind: input, shape index: {}]
  %s12 = inlined_call_operand.hbm [shape: f32[1,2048], index: 12, kind: input, shape index: {}]
  %s13 = inlined_call_operand.<no memory space> [shape: f32[1], index: 13, kind: input, shape index: {}]
  %s14 = inlined_call_operand.hbm [shape: f32[1,1,512], index: 14, kind: output, shape index: {}]
  %s15 = sld [smem:[#allocation0]]
  $region106: #{tpu_custom_call.1} parent=0
    _
  %s17 = ssub.s32 1, %s15
  %s18 = scalar_select 0, %s17, %s15
  %19 = sst [smem:[#allocation5]] %s13
  $region1: #{tpu_custom_call.1} parent=0
    #allocation6 [shape = 'u8[65536]{0}', space=vmem, size = 0x10000, scoped, tag = 'input window, operand 0, single buffered']
    #allocation7 [shape = 's32[1]{0}', space=sflag, size = 0x4, scoped, tag = 'scoped memory for tpu_custom_call.1']
    #allocation8 [shape = 's32[1]{0}', space=sflag, size = 0x4, scoped, tag = 'scoped memory for tpu_custom_call.1']
    #allocation9 [shape = 'u8[8192]{0}', space=vmem, size = 0x2000, scoped, tag = 'input window, operand 2, single buffered']
    #allocation10 [shape = 's32[1]{0}', space=sflag, size = 0x4, scoped, tag = 'scoped memory for tpu_custom_call.1']
    #allocation11 [shape = 'u8[4096]{0}', space=vmem, size = 0x1000, scoped, tag = 'input window, operand 3, single buffered']
    #allocation12 [shape = 'u8[16384]{0}', space=vmem, size = 0x4000, scoped, tag = 'input window, operand 5, single buffered']
    #allocation13 [shape = 's32[1]{0}', space=sflag, size = 0x4, scoped, tag = 'scoped memory for tpu_custom_call.1']
    #allocation14 [shape = 'u8[16384]{0}', space=vmem, size = 0x4000, scoped, tag = 'input window, operand 6, single buffered']
    #allocation15 [shape = 'u8[8192]{0}', space=vmem, size = 0x2000, scoped, tag = 'input window, operand 8, single buffered']
    #allocation16 [shape = 's32[1]{0}', space=sflag, size = 0x4, scoped, tag = 'scoped memory for tpu_custom_call.1']
    #allocation17 [shape = 'u8[8192]{0}', space=vmem, size = 0x2000, scoped, tag = 'input window, operand 9, single buffered']
    #allocation18 [shape = 'u8[8192]{0}', space=vmem, size = 0x2000, scoped, tag = 'input window, operand 10, single buffered']
    #allocation19 [shape = 's32[1]{0}', space=sflag, size = 0x4, scoped, tag = 'scoped memory for tpu_custom_call.1']
    #allocation20 [shape = 'u8[8192]{0}', space=vmem, size = 0x2000, scoped, tag = 'input window, operand 11, single buffered']
    #allocation21 [shape = 'u8[8192]{0}', space=vmem, size = 0x2000, scoped, tag = 'input window, operand 12, single buffered']
    #allocation22 [shape = 's32[1]{0}', space=sflag, size = 0x4, scoped, tag = 'scoped memory for tpu_custom_call.1']
    #allocation23 [shape = 'u8[2048]{0}', space=vmem, size = 0x800, scoped, tag = 'output window, operand 0, single buffered']
    %20 = vsyncpa [#allocation7], 0
    %21 = vsyncpa [#allocation10], 0
    %22 = vsyncpa [#allocation13], 0
    %23 = vsyncpa [#allocation16], 0
    %24 = vsyncpa [#allocation19], 0
    %25 = vsyncpa [#allocation22], 0
    %26 = vsyncpa [#allocation8], 0
    // Predicated region
    $region2: #{tpu_custom_call.1} parent=1 // pred_check
      _
    $region3: #{tpu_custom_call.1} parent=1 // pred_check_branch
      %28 = sbr.rel (0) target = $region5
    $region4: #{tpu_custom_call.1} parent=1 // pred_region
      %30 = vsyncadd [#allocation7], 0
      %s31 = sshll.u32 %s0, 4
      %s32 = int_to_ptr.hbm [resolvable:$true] %s31
      %s33 = sshll.u32 [#allocation6], 4
      %s34 = int_to_ptr.vmem [resolvable:$true] %s33
      %39 = dma.hbm_to_vmem [thread:$0]  %s32, 2048, %s34, [#allocation7], 128, 128, 8
    $region5: #{tpu_custom_call.1} parent=1 // pred_fallthru
      _
    // Predicated region
    $region6: #{tpu_custom_call.1} parent=1 // pred_check
      _
    $region7: #{tpu_custom_call.1} parent=1 // pred_check_branch
      %41 = sbr.rel (0) target = $region9
    $region8: #{tpu_custom_call.1} parent=1 // pred_region
      _
    $region9: #{tpu_custom_call.1} parent=1 // pred_fallthru
      _
    // Predicated region
    $region10: #{tpu_custom_call.1} parent=1 // pred_check
      _
    $region11: #{tpu_custom_call.1} parent=1 // pred_check_branch
      %43 = sbr.rel (0) target = $region13
    $region12: #{tpu_custom_call.1} parent=1 // pred_region
      %45 = vsyncadd [#allocation10], 0
      %s46 = sshll.u32 %s2, 4
      %s47 = int_to_ptr.hbm [resolvable:$true] %s46
      %s48 = sshll.u32 [#allocation9], 4
      %s49 = int_to_ptr.vmem [resolvable:$true] %s48
      %54 = dma.hbm_to_vmem [thread:$0]  %s47, 256, %s49, [#allocation10], 128, 128, 8
    $region13: #{tpu_custom_call.1} parent=1 // pred_fallthru
      _
    // Predicated region
    $region14: #{tpu_custom_call.1} parent=1 // pred_check
      _
    $region15: #{tpu_custom_call.1} parent=1 // pred_check_branch
      %56 = sbr.rel (0) target = $region17
    $region16: #{tpu_custom_call.1} parent=1 // pred_region
      %58 = vsyncadd [#allocation10], 0
      %s60 = sshll.u32 %s3, 4
      %s61 = int_to_ptr.hbm [resolvable:$true] %s60
      %s62 = sshll.u32 [#allocation11], 4
      %s63 = int_to_ptr.vmem [resolvable:$true] %s62
      %65 = dma.hbm_to_vmem [thread:$0]  %s61, 128, %s63, [#allocation10]
    $region17: #{tpu_custom_call.1} parent=1 // pred_fallthru
      _
    // Predicated region
    $region18: #{tpu_custom_call.1} parent=1 // pred_check
      _
    $region19: #{tpu_custom_call.1} parent=1 // pred_check_branch
      %67 = sbr.rel (0) target = $region21
    $region20: #{tpu_custom_call.1} parent=1 // pred_region
      _
    $region21: #{tpu_custom_call.1} parent=1 // pred_fallthru
      _
    // Predicated region
    $region22: #{tpu_custom_call.1} parent=1 // pred_check
      _
    $region23: #{tpu_custom_call.1} parent=1 // pred_check_branch
      %69 = sbr.rel (0) target = $region25
    $region24: #{tpu_custom_call.1} parent=1 // pred_region
      %71 = vsyncadd [#allocation13], 0
      %s72 = sshll.u32 %s5, 4
      %s73 = int_to_ptr.hbm [resolvable:$true] %s72
      %s74 = sshll.u32 [#allocation12], 4
      %s75 = int_to_ptr.vmem [resolvable:$true] %s74
      %80 = dma.hbm_to_vmem [thread:$0]  %s73, 512, %s75, [#allocation13], 128, 128, 8
    $region25: #{tpu_custom_call.1} parent=1 // pred_fallthru
      _
    // Predicated region
    $region26: #{tpu_custom_call.1} parent=1 // pred_check
      _
    $region27: #{tpu_custom_call.1} parent=1 // pred_check_branch
      %82 = sbr.rel (0) target = $region29
    $region28: #{tpu_custom_call.1} parent=1 // pred_region
      %84 = vsyncadd [#allocation13], 0
      %s85 = sshll.u32 %s6, 4
      %s86 = int_to_ptr.hbm [resolvable:$true] %s85
      %s87 = sshll.u32 [#allocation14], 4
      %s88 = int_to_ptr.vmem [resolvable:$true] %s87
      %93 = dma.hbm_to_vmem [thread:$0]  %s86, 512, %s88, [#allocation13], 128, 128, 8
    $region29: #{tpu_custom_call.1} parent=1 // pred_fallthru
      _
    // Predicated region
    $region30: #{tpu_custom_call.1} parent=1 // pred_check
      _
    $region31: #{tpu_custom_call.1} parent=1 // pred_check_branch
      %95 = sbr.rel (0) target = $region33
    $region32: #{tpu_custom_call.1} parent=1 // pred_region
      _
    $region33: #{tpu_custom_call.1} parent=1 // pred_fallthru
      _
    // Predicated region
    $region34: #{tpu_custom_call.1} parent=1 // pred_check
      _
    $region35: #{tpu_custom_call.1} parent=1 // pred_check_branch
      %97 = sbr.rel (0) target = $region37
    $region36: #{tpu_custom_call.1} parent=1 // pred_region
      %99 = vsyncadd [#allocation16], 0
      %s100 = sshll.u32 %s8, 4
      %s101 = int_to_ptr.hbm [resolvable:$true] %s100
      %s102 = sshll.u32 [#allocation15], 4
      %s103 = int_to_ptr.vmem [resolvable:$true] %s102
      %108 = dma.hbm_to_vmem [thread:$0]  %s101, 256, %s103, [#allocation16], 128, 128, 8
    $region37: #{tpu_custom_call.1} parent=1 // pred_fallthru
      _
    // Predicated region
    $region38: #{tpu_custom_call.1} parent=1 // pred_check
      _
    $region39: #{tpu_custom_call.1} parent=1 // pred_check_branch
      %110 = sbr.rel (0) target = $region41
    $region40: #{tpu_custom_call.1} parent=1 // pred_region
      %112 = vsyncadd [#allocation16], 0
      %s114 = sshll.u32 %s9, 4
      %s115 = int_to_ptr.hbm [resolvable:$true] %s114
      %s116 = sshll.u32 [#allocation17], 4
      %s117 = int_to_ptr.vmem [resolvable:$true] %s116
      %119 = dma.hbm_to_vmem [thread:$0]  %s115, 256, %s117, [#allocation16]
    $region41: #{tpu_custom_call.1} parent=1 // pred_fallthru
      _
    // Predicated region
    $region42: #{tpu_custom_call.1} parent=1 // pred_check
      _
    $region43: #{tpu_custom_call.1} parent=1 // pred_check_branch
      %121 = sbr.rel (0) target = $region45
    $region44: #{tpu_custom_call.1} parent=1 // pred_region
      %123 = vsyncadd [#allocation19], 0
      %s125 = sshll.u32 %s10, 4
      %s126 = int_to_ptr.hbm [resolvable:$true] %s125
      %s127 = sshll.u32 [#allocation18], 4
      %s128 = int_to_ptr.vmem [resolvable:$true] %s127
      %130 = dma.hbm_to_vmem [thread:$0]  %s126, 256, %s128, [#allocation19]
    $region45: #{tpu_custom_call.1} parent=1 // pred_fallthru
      _
    // Predicated region
    $region46: #{tpu_custom_call.1} parent=1 // pred_check
      _
    $region47: #{tpu_custom_call.1} parent=1 // pred_check_branch
      %132 = sbr.rel (0) target = $region49
    $region48: #{tpu_custom_call.1} parent=1 // pred_region
      %134 = vsyncadd [#allocation19], 0
      %s136 = sshll.u32 %s11, 4
      %s137 = int_to_ptr.hbm [resolvable:$true] %s136
      %s138 = sshll.u32 [#allocation20], 4
      %s139 = int_to_ptr.vmem [resolvable:$true] %s138
      %141 = dma.hbm_to_vmem [thread:$0]  %s137, 256, %s139, [#allocation19]
    $region49: #{tpu_custom_call.1} parent=1 // pred_fallthru
      _
    // Predicated region
    $region50: #{tpu_custom_call.1} parent=1 // pred_check
      _
    $region51: #{tpu_custom_call.1} parent=1 // pred_check_branch
      %143 = sbr.rel (0) target = $region53
    $region52: #{tpu_custom_call.1} parent=1 // pred_region
      %145 = vsyncadd [#allocation22], 0
      %s147 = sshll.u32 %s12, 4
      %s148 = int_to_ptr.hbm [resolvable:$true] %s147
      %s149 = sshll.u32 [#allocation21], 4
      %s150 = int_to_ptr.vmem [resolvable:$true] %s149
      %152 = dma.hbm_to_vmem [thread:$0]  %s148, 256, %s150, [#allocation22]
    $region53: #{tpu_custom_call.1} parent=1 // pred_fallthru
      _
    // Predicated region
    $region54: #{tpu_custom_call.1} parent=1 // pred_check
      _
    $region55: #{tpu_custom_call.1} parent=1 // pred_check_branch
      %154 = sbr.rel (0) target = $region57
    $region56: #{tpu_custom_call.1} parent=1 // pred_region
      _
    $region57: #{tpu_custom_call.1} parent=1 // pred_fallthru
      _
    // Predicated region
    $region58: #{tpu_custom_call.1} parent=1 // pred_check
      _
    $region59: #{tpu_custom_call.1} parent=1 // pred_check_branch
      %156 = sbr.rel (0) target = $region61
    $region60: #{tpu_custom_call.1} parent=1 // pred_region
      %158 = dma.done [#allocation7], 2048
    $region61: #{tpu_custom_call.1} parent=1 // pred_fallthru
      _
    // Predicated region
    $region62: #{tpu_custom_call.1} parent=1 // pred_check
      _
    $region63: #{tpu_custom_call.1} parent=1 // pred_check_branch
      %160 = sbr.rel (0) target = $region65
    $region64: #{tpu_custom_call.1} parent=1 // pred_region
      %162 = dma.done [#allocation10], 256
    $region65: #{tpu_custom_call.1} parent=1 // pred_fallthru
      _
    // Predicated region
    $region66: #{tpu_custom_call.1} parent=1 // pred_check
      _
    $region67: #{tpu_custom_call.1} parent=1 // pred_check_branch
      %164 = sbr.rel (0) target = $region69
    $region68: #{tpu_custom_call.1} parent=1 // pred_region
      %166 = dma.done [#allocation10], 128
    $region69: #{tpu_custom_call.1} parent=1 // pred_fallthru
      _
    // Predicated region
    $region70: #{tpu_custom_call.1} parent=1 // pred_check
      _
    $region71: #{tpu_custom_call.1} parent=1 // pred_check_branch
      %168 = sbr.rel (0) target = $region73
    $region72: #{tpu_custom_call.1} parent=1 // pred_region
      %170 = dma.done [#allocation13], 512
    $region73: #{tpu_custom_call.1} parent=1 // pred_fallthru
      _
    // Predicated region
    $region74: #{tpu_custom_call.1} parent=1 // pred_check
      _
    $region75: #{tpu_custom_call.1} parent=1 // pred_check_branch
      %172 = sbr.rel (0) target = $region77
    $region76: #{tpu_custom_call.1} parent=1 // pred_region
      %174 = dma.done [#allocation13], 512
    $region77: #{tpu_custom_call.1} parent=1 // pred_fallthru
      _
    // Predicated region
    $region78: #{tpu_custom_call.1} parent=1 // pred_check
      _
    $region79: #{tpu_custom_call.1} parent=1 // pred_check_branch
      %176 = sbr.rel (0) target = $region81
    $region80: #{tpu_custom_call.1} parent=1 // pred_region
      %178 = dma.done [#allocation16], 256
    $region81: #{tpu_custom_call.1} parent=1 // pred_fallthru
      _
    // Predicated region
    $region82: #{tpu_custom_call.1} parent=1 // pred_check
      _
    $region83: #{tpu_custom_call.1} parent=1 // pred_check_branch
      %180 = sbr.rel (0) target = $region85
    $region84: #{tpu_custom_call.1} parent=1 // pred_region
      %182 = dma.done [#allocation16], 256
    $region85: #{tpu_custom_call.1} parent=1 // pred_fallthru
      _
    // Predicated region
    $region86: #{tpu_custom_call.1} parent=1 // pred_check
      _
    $region87: #{tpu_custom_call.1} parent=1 // pred_check_branch
      %184 = sbr.rel (0) target = $region89
    $region88: #{tpu_custom_call.1} parent=1 // pred_region
      %186 = dma.done [#allocation19], 256
    $region89: #{tpu_custom_call.1} parent=1 // pred_fallthru
      _
    // Predicated region
    $region90: #{tpu_custom_call.1} parent=1 // pred_check
      _
    $region91: #{tpu_custom_call.1} parent=1 // pred_check_branch
      %188 = sbr.rel (0) target = $region93
    $region92: #{tpu_custom_call.1} parent=1 // pred_region
      %190 = dma.done [#allocation19], 256
    $region93: #{tpu_custom_call.1} parent=1 // pred_fallthru
      _
    // Predicated region
    $region94: #{tpu_custom_call.1} parent=1 // pred_check
      _
    $region95: #{tpu_custom_call.1} parent=1 // pred_check_branch
      %192 = sbr.rel (0) target = $region97
    $region96: #{tpu_custom_call.1} parent=1 // pred_region
      %194 = dma.done [#allocation22], 256
    $region97: #{tpu_custom_call.1} parent=1 // pred_fallthru
      _
    %v195 = vld [vmem:[#allocation11] sm:$0xff]
    %v196 = vld [vmem:[#allocation6] sm:$0xff]
    %v197 = vld [vmem:[#allocation6 + $0x8] sm:$0xff]
    %v198 = vld [vmem:[#allocation6 + $0x10] sm:$0xff]
    %v199 = vld [vmem:[#allocation6 + $0x18] sm:$0xff]
    %v200 = vld [vmem:[#allocation6 + $0x20] sm:$0xff]
    %v201 = vld [vmem:[#allocation6 + $0x28] sm:$0xff]
    %v202 = vld [vmem:[#allocation6 + $0x30] sm:$0xff]
    %v203 = vld [vmem:[#allocation6 + $0x38] sm:$0xff]
    %v204 = vld [vmem:[#allocation6 + $0x40] sm:$0xff]
    %v205 = vld [vmem:[#allocation6 + $0x48] sm:$0xff]
    %v206 = vld [vmem:[#allocation6 + $0x50] sm:$0xff]
    %v207 = vld [vmem:[#allocation6 + $0x58] sm:$0xff]
    %v208 = vld [vmem:[#allocation6 + $0x60] sm:$0xff]
    %v209 = vld [vmem:[#allocation6 + $0x68] sm:$0xff]
    %v210 = vld [vmem:[#allocation6 + $0x70] sm:$0xff]
    %v211 = vld [vmem:[#allocation6 + $0x78] sm:$0xff]
    %v212 = vld [vmem:[%s4] sm:$0xff]
    %214 = vset.pattern.permute.xlu0 0
    %215 = vperm.xlu0 %214, %v212
    %v216 = vpop.permute.xlu0 %215
    %218 = vmatpush.msra.mxu0 %v211
    %219 = vmatpush.msra.mxu0 %v210
    %220 = vmatpush.msra.mxu0 %v209
    %221 = vmatpush.msra.mxu0 %v208
    %222 = vmatpush.msra.mxu0 %v207
    %223 = vmatpush.msra.mxu0 %v206
    %224 = vmatpush.msra.mxu0 %v205
    %225 = vmatpush.msra.mxu0 %v204
    %226 = vmatpush.msra.mxu0 %v203
    %227 = vmatpush.msra.mxu0 %v202
    %228 = vmatpush.msra.mxu0 %v201
    %229 = vmatpush.msra.mxu0 %v200
    %230 = vmatpush.msra.mxu0 %v199
    %231 = vmatpush.msra.mxu0 %v198
    %232 = vmatpush.msra.mxu0 %v197
    %233 = vmatpush.msra.mxu0 %v196
    %234 = vmatmul.f32.gmra.mxu0 %v195
    %v235 = vpop.f32.mrf.mxu0
    %v236 = vadd.f32 %v216, %v235
    %237 = vdwg.mxu0
    %vm238 = vcmp.ge.f32.partialorder %v236, 0.0
    %v239 = vmul.f32 %v236, 0.2
    %v240 = vsel %vm238, %v236, %v239
    %242 = vrot.lane.b32.xlu0 %v240, 9
    %v243 = vpop.permute.xlu0 %242
    %v245 = vld [vmem:[#allocation15] sm:$0x1]
    %v246 = vperm.slane %v245, 0
    %v247 = vmul.f32 %v243, %v246
    %248 = vst [vmem:[#allocation2] sm:$0xff] %v247
    %249 = vrot.lane.b32.xlu0 %v240, 8
    %v250 = vpop.permute.xlu0 %249
    %v252 = vld [vmem:[#allocation15 + $0x1] sm:$0x1]
    %v253 = vperm.slane %v252, 0
    %v254 = vmul.f32 %v250, %v253
    %255 = vst [vmem:[#allocation2 + $0x8] sm:$0xff] %v254
    %256 = vrot.lane.b32.xlu0 %v240, 7
    %v257 = vpop.permute.xlu0 %256
    %v259 = vld [vmem:[#allocation15 + $0x2] sm:$0x1]
    %v260 = vperm.slane %v259, 0
    %v261 = vmul.f32 %v257, %v260
    %262 = vst [vmem:[#allocation2 + $0x10] sm:$0xff] %v261
    %263 = vrot.lane.b32.xlu0 %v240, 1
    %v264 = vpop.permute.xlu0 %263
    %v266 = vld [vmem:[#allocation15 + $0x3] sm:$0x1]
    %v267 = vperm.slane %v266, 0
    %v268 = vmul.f32 %v264, %v267
    %269 = vst [vmem:[#allocation2 + $0x18] sm:$0xff] %v268
    %v270 = vld [vmem:[#allocation15 + $0x4] sm:$0x1]
    %v271 = vperm.slane %v270, 0
    %v272 = vmul.f32 %v240, %v271
    %273 = vst [vmem:[#allocation2 + $0x20] sm:$0xff] %v272
    %274 = vrot.lane.b32.xlu0 %v240, 127
    %v275 = vpop.permute.xlu0 %274
    %v277 = vld [vmem:[#allocation15 + $0x5] sm:$0x1]
    %v278 = vperm.slane %v277, 0
    %v279 = vmul.f32 %v275, %v278
    %280 = vst [vmem:[#allocation2 + $0x28] sm:$0xff] %v279
    %281 = vrot.lane.b32.xlu0 %v240, 121
    %v282 = vpop.permute.xlu0 %281
    %v284 = vld [vmem:[#allocation15 + $0x6] sm:$0x1]
    %v285 = vperm.slane %v284, 0
    %v286 = vmul.f32 %v282, %v285
    %287 = vst [vmem:[#allocation2 + $0x30] sm:$0xff] %v286
    %288 = vrot.lane.b32.xlu0 %v240, 120
    %v289 = vpop.permute.xlu0 %288
    %v291 = vld [vmem:[#allocation15 + $0x7] sm:$0x1]
    %v292 = vperm.slane %v291, 0
    %v293 = vmul.f32 %v289, %v292
    %294 = vst [vmem:[#allocation2 + $0x38] sm:$0xff] %v293
    %295 = vrot.lane.b32.xlu0 %v240, 119
    %v296 = vpop.permute.xlu0 %295
    %v298 = vld [vmem:[#allocation15 + $0x8] sm:$0x1]
    %v299 = vperm.slane %v298, 0
    %v300 = vmul.f32 %v296, %v299
    %301 = vst [vmem:[#allocation2 + $0x40] sm:$0xff] %v300
    %v302 = vld [vmem:[#allocation12] sm:$0xff]
    %v303 = vld [vmem:[#allocation12 + $0x8] sm:$0xff]
    %v304 = vld [vmem:[#allocation12 + $0x10] sm:$0xff]
    %v305 = vld [vmem:[#allocation12 + $0x18] sm:$0xff]
    %v306 = vld [vmem:[#allocation2] sm:$0xff]
    %v307 = vld [vmem:[#allocation2 + $0x8] sm:$0xff]
    %v308 = vld [vmem:[#allocation2 + $0x10] sm:$0xff]
    %v309 = vld [vmem:[#allocation2 + $0x18] sm:$0xff]
    %v310 = vld [vmem:[#allocation2 + $0x20] sm:$0xff]
    %v311 = vld [vmem:[#allocation2 + $0x28] sm:$0xff]
    %v312 = vld [vmem:[#allocation2 + $0x30] sm:$0xff]
    %v313 = vld [vmem:[#allocation2 + $0x38] sm:$0xff]
    %v314 = vld [vmem:[#allocation2 + $0x40] sm:$0xff]
    %v315 = vld [vmem:[#allocation14] sm:$0xff]
    %v316 = vld [vmem:[#allocation14 + $0x8] sm:$0xff]
    %v317 = vld [vmem:[#allocation14 + $0x10] sm:$0xff]
    %v318 = vld [vmem:[#allocation14 + $0x18] sm:$0xff]
    %v319 = vld [vmem:[%s1] sm:$0xff]
    %v320 = vld [vmem:[%s1 + $0x8] sm:$0xff]
    %v321 = vld [vmem:[%s1 + $0x10] sm:$0xff]
    %v322 = vld [vmem:[%s1 + $0x18] sm:$0xff]
    %v323 = vld [vmem:[%s1 + $0x20] sm:$0xf]
    %vm324 = vcmask 293888
    %v326 = vsel %vm324, %v315, 0
    %v329 = vsel %vm324, %v316, 0
    %v332 = vsel %vm324, %v317, 0
    %v335 = vsel %vm324, %v318, 0
    %vm337 = vcmask 1043456
    %v339 = vsel %vm337, %v323, 0
    %341 = vmatpush.msra.mxu0 0.0
    %342 = vmatpush.msra.mxu0 0.0
    %343 = vmatpush.msra.mxu0 0.0
    %344 = vmatpush.msra.mxu0 0.0
    %345 = vmatpush.msra.mxu0 0.0
    %346 = vmatpush.msra.mxu0 0.0
    %347 = vmatpush.msra.mxu0 0.0
    %348 = vmatpush.msra.mxu0 0.0
    %349 = vmatpush.msra.mxu0 0.0
    %350 = vmatpush.msra.mxu0 0.0
    %351 = vmatpush.msra.mxu0 0.0
    %352 = vmatpush.msra.mxu0 %v339
    %353 = vmatpush.msra.mxu0 %v322
    %354 = vmatpush.msra.mxu0 %v321
    %355 = vmatpush.msra.mxu0 %v320
    %356 = vmatpush.msra.mxu0 %v319
    %357 = vmatmul.f32.gmra.mxu0 %v326
    %v358 = vpop.f32.mrf.mxu0
    %v359 = vadd.f32 0.0, %v358
    %360 = vmatmul.f32.gmra.mxu0 %v329
    %v361 = vpop.f32.mrf.mxu0
    %v362 = vadd.f32 0.0, %v361
    %363 = vmatmul.f32.gmra.mxu0 %v332
    %v364 = vpop.f32.mrf.mxu0
    %v365 = vadd.f32 0.0, %v364
    %366 = vmatmul.f32.gmra.mxu0 %v335
    %v367 = vpop.f32.mrf.mxu0
    %v368 = vadd.f32 0.0, %v367
    %369 = vdwg.mxu0
    %vm370 = vcmask 588800
    %v372 = vsel %vm370, %v302, 0
    %v375 = vsel %vm370, %v303, 0
    %v378 = vsel %vm370, %v304, 0
    %v381 = vsel %vm370, %v305, 0
    %383 = vmatpush.msra.mxu0 0.0
    %384 = vmatpush.msra.mxu0 0.0
    %385 = vmatpush.msra.mxu0 0.0
    %386 = vmatpush.msra.mxu0 0.0
    %387 = vmatpush.msra.mxu0 0.0
    %388 = vmatpush.msra.mxu0 0.0
    %389 = vmatpush.msra.mxu0 0.0
    %390 = vmatpush.msra.mxu0 %v314
    %391 = vmatpush.msra.mxu0 %v313
    %392 = vmatpush.msra.mxu0 %v312
    %393 = vmatpush.msra.mxu0 %v311
    %394 = vmatpush.msra.mxu0 %v310
    %395 = vmatpush.msra.mxu0 %v309
    %396 = vmatpush.msra.mxu0 %v308
    %397 = vmatpush.msra.mxu0 %v307
    %398 = vmatpush.msra.mxu0 %v306
    %399 = vmatmul.f32.gmra.mxu0 %v372
    %v400 = vpop.f32.mrf.mxu0
    %v401 = vadd.f32 %v359, %v400
    %402 = vmatmul.f32.gmra.mxu0 %v375
    %v403 = vpop.f32.mrf.mxu0
    %v404 = vadd.f32 %v362, %v403
    %405 = vmatmul.f32.gmra.mxu0 %v378
    %v406 = vpop.f32.mrf.mxu0
    %v407 = vadd.f32 %v365, %v406
    %408 = vmatmul.f32.gmra.mxu0 %v381
    %v409 = vpop.f32.mrf.mxu0
    %v410 = vadd.f32 %v368, %v409
    %411 = vdwg.mxu0
    %v412 = vld [vmem:[%s7] sm:$0xff]
    %v413 = vld [vmem:[%s7 + $0x8] sm:$0xff]
    %v414 = vld [vmem:[%s7 + $0x10] sm:$0xff]
    %v415 = vld [vmem:[%s7 + $0x18] sm:$0xff]
    %417 = vset.pattern.permute.xlu0 0
    %418 = vperm.xlu0 %417, %v412
    %v419 = vpop.permute.xlu0 %418
    %422 = vset.pattern.permute.xlu0 0
    %423 = vperm.xlu0 %422, %v413
    %v424 = vpop.permute.xlu0 %423
    %427 = vset.pattern.permute.xlu0 0
    %428 = vperm.xlu0 %427, %v414
    %v429 = vpop.permute.xlu0 %428
    %432 = vset.pattern.permute.xlu0 0
    %433 = vperm.xlu0 %432, %v415
    %v434 = vpop.permute.xlu0 %433
    %v436 = vadd.f32 %v401, %v419
    %v437 = vadd.f32 %v404, %v424
    %v438 = vadd.f32 %v407, %v429
    %v439 = vadd.f32 %v410, %v434
    %vm440 = vcmp.ge.f32.partialorder %v436, 0.0
    %vm441 = vcmp.ge.f32.partialorder %v437, 0.0
    %vm442 = vcmp.ge.f32.partialorder %v438, 0.0
    %vm443 = vcmp.ge.f32.partialorder %v439, 0.0
    %v444 = vmul.f32 %v436, 0.2
    %v445 = vmul.f32 %v437, 0.2
    %v446 = vmul.f32 %v438, 0.2
    %v447 = vmul.f32 %v439, 0.2
    %v448 = vsel %vm440, %v436, %v444
    %v449 = vsel %vm441, %v437, %v445
    %v450 = vsel %vm442, %v438, %v446
    %v451 = vsel %vm443, %v439, %v447
    %452 = vst [vmem:[#allocation3] sm:$0xff] %v448
    %453 = vst [vmem:[#allocation3 + $0x8] sm:$0xff] %v449
    %454 = vst [vmem:[#allocation3 + $0x10] sm:$0xff] %v450
    %455 = vst [vmem:[#allocation3 + $0x18] sm:$0xff] %v451
    %v456 = vld [vmem:[#allocation3] sm:$0x1]
    %457 = vst [vmem:[#allocation4] sm:$0x1] %v456
    %v458 = vld [vmem:[#allocation3 + $0x10] sm:$0x1]
    %459 = vst [vmem:[#allocation4 + $0x1] sm:$0x1] %v458
    %v460 = vld [vmem:[#allocation3 + $0x1] sm:$0x1]
    %461 = vst [vmem:[#allocation4 + $0x2] sm:$0x1] %v460
    %v462 = vld [vmem:[#allocation3 + $0x11] sm:$0x1]
    %463 = vst [vmem:[#allocation4 + $0x3] sm:$0x1] %v462
    %v464 = vld [vmem:[#allocation3 + $0x2] sm:$0x1]
    %465 = vst [vmem:[#allocation4 + $0x4] sm:$0x1] %v464
    %v466 = vld [vmem:[#allocation3 + $0x12] sm:$0x1]
    %467 = vst [vmem:[#allocation4 + $0x5] sm:$0x1] %v466
    %v468 = vld [vmem:[#allocation3 + $0x3] sm:$0x1]
    %469 = vst [vmem:[#allocation4 + $0x6] sm:$0x1] %v468
    %v470 = vld [vmem:[#allocation3 + $0x13] sm:$0x1]
    %471 = vst [vmem:[#allocation4 + $0x7] sm:$0x1] %v470
    %v472 = vld [vmem:[#allocation3 + $0x4] sm:$0x1]
    %473 = vst [vmem:[#allocation4 + $0x8] sm:$0x1] %v472
    %v474 = vld [vmem:[#allocation3 + $0x14] sm:$0x1]
    %475 = vst [vmem:[#allocation4 + $0x9] sm:$0x1] %v474
    %v476 = vld [vmem:[#allocation3 + $0x5] sm:$0x1]
    %477 = vst [vmem:[#allocation4 + $0xa] sm:$0x1] %v476
    %v478 = vld [vmem:[#allocation3 + $0x15] sm:$0x1]
    %479 = vst [vmem:[#allocation4 + $0xb] sm:$0x1] %v478
    %v480 = vld [vmem:[#allocation3 + $0x6] sm:$0x1]
    %481 = vst [vmem:[#allocation4 + $0xc] sm:$0x1] %v480
    %v482 = vld [vmem:[#allocation3 + $0x16] sm:$0x1]
    %483 = vst [vmem:[#allocation4 + $0xd] sm:$0x1] %v482
    %v484 = vld [vmem:[#allocation3 + $0x7] sm:$0x1]
    %485 = vst [vmem:[#allocation4 + $0xe] sm:$0x1] %v484
    %v486 = vld [vmem:[#allocation3 + $0x17] sm:$0x1]
    %487 = vst [vmem:[#allocation4 + $0xf] sm:$0x1] %v486
    %v488 = vld [vmem:[#allocation3 + $0x8] sm:$0x1]
    %489 = vst [vmem:[#allocation4 + $0x10] sm:$0x1] %v488
    %v490 = vld [vmem:[#allocation3 + $0x18] sm:$0x1]
    %491 = vst [vmem:[#allocation4 + $0x11] sm:$0x1] %v490
    %v492 = vld [vmem:[#allocation3 + $0x9] sm:$0x1]
    %493 = vst [vmem:[#allocation4 + $0x12] sm:$0x1] %v492
    %v494 = vld [vmem:[#allocation3 + $0x19] sm:$0x1]
    %495 = vst [vmem:[#allocation4 + $0x13] sm:$0x1] %v494
    %v496 = vld [vmem:[#allocation3 + $0xa] sm:$0x1]
    %497 = vst [vmem:[#allocation4 + $0x14] sm:$0x1] %v496
    %v498 = vld [vmem:[#allocation3 + $0x1a] sm:$0x1]
    %499 = vst [vmem:[#allocation4 + $0x15] sm:$0x1] %v498
    %v500 = vld [vmem:[#allocation3 + $0xb] sm:$0x1]
    %501 = vst [vmem:[#allocation4 + $0x16] sm:$0x1] %v500
    %v502 = vld [vmem:[#allocation3 + $0x1b] sm:$0x1]
    %503 = vst [vmem:[#allocation4 + $0x17] sm:$0x1] %v502
    %v504 = vld [vmem:[#allocation3 + $0xc] sm:$0x1]
    %505 = vst [vmem:[#allocation4 + $0x18] sm:$0x1] %v504
    %v506 = vld [vmem:[#allocation3 + $0x1c] sm:$0x1]
    %507 = vst [vmem:[#allocation4 + $0x19] sm:$0x1] %v506
    %v508 = vld [vmem:[#allocation3 + $0xd] sm:$0x1]
    %509 = vst [vmem:[#allocation4 + $0x1a] sm:$0x1] %v508
    %v510 = vld [vmem:[#allocation3 + $0x1d] sm:$0x1]
    %511 = vst [vmem:[#allocation4 + $0x1b] sm:$0x1] %v510
    %v512 = vld [vmem:[#allocation3 + $0xe] sm:$0x1]
    %513 = vst [vmem:[#allocation4 + $0x1c] sm:$0x1] %v512
    %v514 = vld [vmem:[#allocation3 + $0x1e] sm:$0x1]
    %515 = vst [vmem:[#allocation4 + $0x1d] sm:$0x1] %v514
    %v516 = vld [vmem:[#allocation3 + $0xf] sm:$0x1]
    %517 = vst [vmem:[#allocation4 + $0x1e] sm:$0x1] %v516
    %v518 = vld [vmem:[#allocation3 + $0x1f] sm:$0x1]
    %519 = vst [vmem:[#allocation4 + $0x1f] sm:$0x1] %v518
    %v520 = vld [vmem:[#allocation4] ss:$2 sm:$0xff]
    %s521 = scalar_lea.vmem [#allocation4], 16
    %v522 = vld [vmem:[%s521] ss:$2 sm:$0xff]
    %s523 = scalar_lea.vmem [#allocation4], 1
    %v524 = vld [vmem:[%s523] ss:$2 sm:$0xff]
    %s525 = scalar_lea.vmem [#allocation4], 17
    %v526 = vld [vmem:[%s525] ss:$2 sm:$0xff]
    %v527 = vld [vmem:[#allocation20] sm:$0xff]
    %v528 = vld [vmem:[#allocation20 + $0x8] sm:$0xff]
    %v529 = vld [vmem:[#allocation17] sm:$0xff]
    %v530 = vld [vmem:[#allocation17 + $0x8] sm:$0xff]
    %v531 = vadd.f32 %v529, %v520
    %v532 = vadd.f32 %v530, %v522
    %v533 = vadd.f32 %v531, 1.0
    %v534 = vadd.f32 %v532, 1.0
    %v535 = vmul.f32 %v533, 8.0
    %v536 = vmul.f32 %v534, 8.0
    %v537 = vsub.f32 %v535, 0.5
    %v538 = vsub.f32 %v536, 0.5
    %v539 = vmax.f32 %v537, 0.0
    %v540 = vmax.f32 %v538, 0.0
    %v541 = vmin.f32 %v539, 15.0
    %v542 = vmin.f32 %v540, 15.0
    %v543 = vld [vmem:[#allocation18] sm:$0xff]
    %v544 = vld [vmem:[#allocation18 + $0x8] sm:$0xff]
    %v545 = vadd.f32 %v543, %v524
    %v546 = vadd.f32 %v544, %v526
    %v547 = vadd.f32 %v545, 1.0
    %v548 = vadd.f32 %v546, 1.0
    %v549 = vmul.f32 %v547, 8.0
    %v550 = vmul.f32 %v548, 8.0
    %v551 = vsub.f32 %v549, 0.5
    %v552 = vsub.f32 %v550, 0.5
    %v553 = vmax.f32 %v551, 0.0
    %v554 = vmax.f32 %v552, 0.0
    %v555 = vmin.f32 %v553, 15.0
    %v556 = vmin.f32 %v554, 15.0
    %v557 = vcvt.f32.s32.to.zero.pseudo %v541
    %v558 = vcvt.f32.s32.to.zero.pseudo %v542
    %v559 = vcvt.s32.f32 %v557
    %v560 = vcvt.s32.f32 %v558
    %v561 = vsub.f32 %v541, %v559
    %v562 = vsub.f32 %v542, %v560
    %v563 = vcvt.f32.s32.to.zero.pseudo %v555
    %v564 = vcvt.f32.s32.to.zero.pseudo %v556
    %v565 = vcvt.s32.f32 %v563
    %v566 = vcvt.s32.f32 %v564
    %v567 = vsub.f32 %v555, %v565
    %v568 = vsub.f32 %v556, %v566
    %v569 = vadd.s32 %v557, 1
    %v570 = vadd.s32 %v558, 1
    %vm571 = vcmp.lt.s32.totalorder %v569, 15
    %v572 = vsel %vm571, %v569, 15
    %vm573 = vcmp.lt.s32.totalorder %v570, 15
    %v574 = vsel %vm573, %v570, 15
    %v575 = vadd.s32 %v572, %v527
    %v576 = vadd.s32 %v574, %v528
    %v577 = vadd.s32 %v557, %v527
    %v578 = vadd.s32 %v558, %v528
    %v579 = vadd.s32 %v563, 1
    %v580 = vadd.s32 %v564, 1
    %vm581 = vcmp.lt.s32.totalorder %v579, 15
    %v582 = vsel %vm581, %v579, 15
    %vm583 = vcmp.lt.s32.totalorder %v580, 15
    %v584 = vsel %vm583, %v580, 15
    %v585 = vlaneseq
    %v586 = vshrl.u32 %v585, 7
    %v587 = vadd.s32 %v586, 8
    %v588 = vadd.s32 %v586, 16
    %v589 = vadd.s32 %v586, 24
    %v590 = vperm.slane %v577, 0
    %v591 = vperm.slane %v577, 1
    %v592 = vperm.slane %v577, 2
    %v593 = vperm.slane %v577, 3
    %v594 = vperm.slane %v577, 4
    %v595 = vperm.slane %v577, 5
    %v596 = vperm.slane %v577, 6
    %v597 = vperm.slane %v577, 7
    %v598 = vperm.slane %v578, 0
    %v599 = vperm.slane %v578, 1
    %v600 = vperm.slane %v578, 2
    %v601 = vperm.slane %v578, 3
    %v602 = vperm.slane %v578, 4
    %v603 = vperm.slane %v578, 5
    %v604 = vperm.slane %v578, 6
    %v605 = vperm.slane %v578, 7
    %vm606 = vcmp.eq.s32.totalorder %v586, %v590
    %vm607 = vcmp.eq.s32.totalorder %v586, %v591
    %vm608 = vcmp.eq.s32.totalorder %v586, %v592
    %vm609 = vcmp.eq.s32.totalorder %v586, %v593
    %vm610 = vcmp.eq.s32.totalorder %v586, %v594
    %vm611 = vcmp.eq.s32.totalorder %v586, %v595
    %vm612 = vcmp.eq.s32.totalorder %v586, %v596
    %vm613 = vcmp.eq.s32.totalorder %v586, %v597
    %vm614 = vcmp.eq.s32.totalorder %v586, %v598
    %vm615 = vcmp.eq.s32.totalorder %v586, %v599
    %vm616 = vcmp.eq.s32.totalorder %v586, %v600
    %vm617 = vcmp.eq.s32.totalorder %v586, %v601
    %vm618 = vcmp.eq.s32.totalorder %v586, %v602
    %vm619 = vcmp.eq.s32.totalorder %v586, %v603
    %vm620 = vcmp.eq.s32.totalorder %v586, %v604
    %vm621 = vcmp.eq.s32.totalorder %v586, %v605
    %vm622 = vcmp.eq.s32.totalorder %v587, %v590
    %vm623 = vcmp.eq.s32.totalorder %v587, %v591
    %vm624 = vcmp.eq.s32.totalorder %v587, %v592
    %vm625 = vcmp.eq.s32.totalorder %v587, %v593
    %vm626 = vcmp.eq.s32.totalorder %v587, %v594
    %vm627 = vcmp.eq.s32.totalorder %v587, %v595
    %vm628 = vcmp.eq.s32.totalorder %v587, %v596
    %vm629 = vcmp.eq.s32.totalorder %v587, %v597
    %vm630 = vcmp.eq.s32.totalorder %v587, %v598
    %vm631 = vcmp.eq.s32.totalorder %v587, %v599
    %vm632 = vcmp.eq.s32.totalorder %v587, %v600
    %vm633 = vcmp.eq.s32.totalorder %v587, %v601
    %vm634 = vcmp.eq.s32.totalorder %v587, %v602
    %vm635 = vcmp.eq.s32.totalorder %v587, %v603
    %vm636 = vcmp.eq.s32.totalorder %v587, %v604
    %vm637 = vcmp.eq.s32.totalorder %v587, %v605
    %vm638 = vcmp.eq.s32.totalorder %v588, %v590
    %vm639 = vcmp.eq.s32.totalorder %v588, %v591
    %vm640 = vcmp.eq.s32.totalorder %v588, %v592
    %vm641 = vcmp.eq.s32.totalorder %v588, %v593
    %vm642 = vcmp.eq.s32.totalorder %v588, %v594
    %vm643 = vcmp.eq.s32.totalorder %v588, %v595
    %vm644 = vcmp.eq.s32.totalorder %v588, %v596
    %vm645 = vcmp.eq.s32.totalorder %v588, %v597
    %vm646 = vcmp.eq.s32.totalorder %v588, %v598
    %vm647 = vcmp.eq.s32.totalorder %v588, %v599
    %vm648 = vcmp.eq.s32.totalorder %v588, %v600
    %vm649 = vcmp.eq.s32.totalorder %v588, %v601
    %vm650 = vcmp.eq.s32.totalorder %v588, %v602
    %vm651 = vcmp.eq.s32.totalorder %v588, %v603
    %vm652 = vcmp.eq.s32.totalorder %v588, %v604
    %vm653 = vcmp.eq.s32.totalorder %v588, %v605
    %vm654 = vcmp.eq.s32.totalorder %v589, %v590
    %vm655 = vcmp.eq.s32.totalorder %v589, %v591
    %vm656 = vcmp.eq.s32.totalorder %v589, %v592
    %vm657 = vcmp.eq.s32.totalorder %v589, %v593
    %vm658 = vcmp.eq.s32.totalorder %v589, %v594
    %vm659 = vcmp.eq.s32.totalorder %v589, %v595
    %vm660 = vcmp.eq.s32.totalorder %v589, %v596
    %vm661 = vcmp.eq.s32.totalorder %v589, %v597
    %vm662 = vcmp.eq.s32.totalorder %v589, %v598
    %vm663 = vcmp.eq.s32.totalorder %v589, %v599
    %vm664 = vcmp.eq.s32.totalorder %v589, %v600
    %vm665 = vcmp.eq.s32.totalorder %v589, %v601
    %vm666 = vcmp.eq.s32.totalorder %v589, %v602
    %vm667 = vcmp.eq.s32.totalorder %v589, %v603
    %vm668 = vcmp.eq.s32.totalorder %v589, %v604
    %vm669 = vcmp.eq.s32.totalorder %v589, %v605
    %v670 = vsub.f32 1.0, %v561
    %v671 = vsub.f32 1.0, %v562
    %v674 = vperm.slane %v670, 0
    %v675 = vperm.slane %v670, 1
    %v676 = vperm.slane %v670, 2
    %v677 = vperm.slane %v670, 3
    %v678 = vperm.slane %v670, 4
    %v679 = vperm.slane %v670, 5
    %v680 = vperm.slane %v670, 6
    %v681 = vperm.slane %v670, 7
    %v682 = vperm.slane %v671, 0
    %v683 = vperm.slane %v671, 1
    %v684 = vperm.slane %v671, 2
    %v685 = vperm.slane %v671, 3
    %v686 = vperm.slane %v671, 4
    %v687 = vperm.slane %v671, 5
    %v688 = vperm.slane %v671, 6
    %v689 = vperm.slane %v671, 7
    %v706 = vsel %vm606, %v674, 0.0
    %v707 = vsel %vm607, %v675, 0.0
    %v708 = vsel %vm608, %v676, 0.0
    %v709 = vsel %vm609, %v677, 0.0
    %v710 = vsel %vm610, %v678, 0.0
    %v711 = vsel %vm611, %v679, 0.0
    %v712 = vsel %vm612, %v680, 0.0
    %v713 = vsel %vm613, %v681, 0.0
    %v714 = vsel %vm614, %v682, 0.0
    %v715 = vsel %vm615, %v683, 0.0
    %v716 = vsel %vm616, %v684, 0.0
    %v717 = vsel %vm617, %v685, 0.0
    %v718 = vsel %vm618, %v686, 0.0
    %v719 = vsel %vm619, %v687, 0.0
    %v720 = vsel %vm620, %v688, 0.0
    %v721 = vsel %vm621, %v689, 0.0
    %v722 = vsel %vm622, %v674, 0.0
    %v723 = vsel %vm623, %v675, 0.0
    %v724 = vsel %vm624, %v676, 0.0
    %v725 = vsel %vm625, %v677, 0.0
    %v726 = vsel %vm626, %v678, 0.0
    %v727 = vsel %vm627, %v679, 0.0
    %v728 = vsel %vm628, %v680, 0.0
    %v729 = vsel %vm629, %v681, 0.0
    %v730 = vsel %vm630, %v682, 0.0
    %v731 = vsel %vm631, %v683, 0.0
    %v732 = vsel %vm632, %v684, 0.0
    %v733 = vsel %vm633, %v685, 0.0
    %v734 = vsel %vm634, %v686, 0.0
    %v735 = vsel %vm635, %v687, 0.0
    %v736 = vsel %vm636, %v688, 0.0
    %v737 = vsel %vm637, %v689, 0.0
    %v738 = vsel %vm638, %v674, 0.0
    %v739 = vsel %vm639, %v675, 0.0
    %v740 = vsel %vm640, %v676, 0.0
    %v741 = vsel %vm641, %v677, 0.0
    %v742 = vsel %vm642, %v678, 0.0
    %v743 = vsel %vm643, %v679, 0.0
    %v744 = vsel %vm644, %v680, 0.0
    %v745 = vsel %vm645, %v681, 0.0
    %v746 = vsel %vm646, %v682, 0.0
    %v747 = vsel %vm647, %v683, 0.0
    %v748 = vsel %vm648, %v684, 0.0
    %v749 = vsel %vm649, %v685, 0.0
    %v750 = vsel %vm650, %v686, 0.0
    %v751 = vsel %vm651, %v687, 0.0
    %v752 = vsel %vm652, %v688, 0.0
    %v753 = vsel %vm653, %v689, 0.0
    %v754 = vsel %vm654, %v674, 0.0
    %v755 = vsel %vm655, %v675, 0.0
    %v756 = vsel %vm656, %v676, 0.0
    %v757 = vsel %vm657, %v677, 0.0
    %v758 = vsel %vm658, %v678, 0.0
    %v759 = vsel %vm659, %v679, 0.0
    %v760 = vsel %vm660, %v680, 0.0
    %v761 = vsel %vm661, %v681, 0.0
    %v762 = vsel %vm662, %v682, 0.0
    %v763 = vsel %vm663, %v683, 0.0
    %v764 = vsel %vm664, %v684, 0.0
    %v765 = vsel %vm665, %v685, 0.0
    %v766 = vsel %vm666, %v686, 0.0
    %v767 = vsel %vm667, %v687, 0.0
    %v768 = vsel %vm668, %v688, 0.0
    %v769 = vsel %vm669, %v689, 0.0
    %v770 = vperm.slane %v575, 0
    %v771 = vperm.slane %v575, 1
    %v772 = vperm.slane %v575, 2
    %v773 = vperm.slane %v575, 3
    %v774 = vperm.slane %v575, 4
    %v775 = vperm.slane %v575, 5
    %v776 = vperm.slane %v575, 6
    %v777 = vperm.slane %v575, 7
    %v778 = vperm.slane %v576, 0
    %v779 = vperm.slane %v576, 1
    %v780 = vperm.slane %v576, 2
    %v781 = vperm.slane %v576, 3
    %v782 = vperm.slane %v576, 4
    %v783 = vperm.slane %v576, 5
    %v784 = vperm.slane %v576, 6
    %v785 = vperm.slane %v576, 7
    %vm786 = vcmp.eq.s32.totalorder %v586, %v770
    %vm787 = vcmp.eq.s32.totalorder %v586, %v771
    %vm788 = vcmp.eq.s32.totalorder %v586, %v772
    %vm789 = vcmp.eq.s32.totalorder %v586, %v773
    %vm790 = vcmp.eq.s32.totalorder %v586, %v774
    %vm791 = vcmp.eq.s32.totalorder %v586, %v775
    %vm792 = vcmp.eq.s32.totalorder %v586, %v776
    %vm793 = vcmp.eq.s32.totalorder %v586, %v777
    %vm794 = vcmp.eq.s32.totalorder %v586, %v778
    %vm795 = vcmp.eq.s32.totalorder %v586, %v779
    %vm796 = vcmp.eq.s32.totalorder %v586, %v780
    %vm797 = vcmp.eq.s32.totalorder %v586, %v781
    %vm798 = vcmp.eq.s32.totalorder %v586, %v782
    %vm799 = vcmp.eq.s32.totalorder %v586, %v783
    %vm800 = vcmp.eq.s32.totalorder %v586, %v784
    %vm801 = vcmp.eq.s32.totalorder %v586, %v785
    %vm802 = vcmp.eq.s32.totalorder %v587, %v770
    %vm803 = vcmp.eq.s32.totalorder %v587, %v771
    %vm804 = vcmp.eq.s32.totalorder %v587, %v772
    %vm805 = vcmp.eq.s32.totalorder %v587, %v773
    %vm806 = vcmp.eq.s32.totalorder %v587, %v774
    %vm807 = vcmp.eq.s32.totalorder %v587, %v775
    %vm808 = vcmp.eq.s32.totalorder %v587, %v776
    %vm809 = vcmp.eq.s32.totalorder %v587, %v777
    %vm810 = vcmp.eq.s32.totalorder %v587, %v778
    %vm811 = vcmp.eq.s32.totalorder %v587, %v779
    %vm812 = vcmp.eq.s32.totalorder %v587, %v780
    %vm813 = vcmp.eq.s32.totalorder %v587, %v781
    %vm814 = vcmp.eq.s32.totalorder %v587, %v782
    %vm815 = vcmp.eq.s32.totalorder %v587, %v783
    %vm816 = vcmp.eq.s32.totalorder %v587, %v784
    %vm817 = vcmp.eq.s32.totalorder %v587, %v785
    %vm818 = vcmp.eq.s32.totalorder %v588, %v770
    %vm819 = vcmp.eq.s32.totalorder %v588, %v771
    %vm820 = vcmp.eq.s32.totalorder %v588, %v772
    %vm821 = vcmp.eq.s32.totalorder %v588, %v773
    %vm822 = vcmp.eq.s32.totalorder %v588, %v774
    %vm823 = vcmp.eq.s32.totalorder %v588, %v775
    %vm824 = vcmp.eq.s32.totalorder %v588, %v776
    %vm825 = vcmp.eq.s32.totalorder %v588, %v777
    %vm826 = vcmp.eq.s32.totalorder %v588, %v778
    %vm827 = vcmp.eq.s32.totalorder %v588, %v779
    %vm828 = vcmp.eq.s32.totalorder %v588, %v780
    %vm829 = vcmp.eq.s32.totalorder %v588, %v781
    %vm830 = vcmp.eq.s32.totalorder %v588, %v782
    %vm831 = vcmp.eq.s32.totalorder %v588, %v783
    %vm832 = vcmp.eq.s32.totalorder %v588, %v784
    %vm833 = vcmp.eq.s32.totalorder %v588, %v785
    %vm834 = vcmp.eq.s32.totalorder %v589, %v770
    %vm835 = vcmp.eq.s32.totalorder %v589, %v771
    %vm836 = vcmp.eq.s32.totalorder %v589, %v772
    %vm837 = vcmp.eq.s32.totalorder %v589, %v773
    %vm838 = vcmp.eq.s32.totalorder %v589, %v774
    %vm839 = vcmp.eq.s32.totalorder %v589, %v775
    %vm840 = vcmp.eq.s32.totalorder %v589, %v776
    %vm841 = vcmp.eq.s32.totalorder %v589, %v777
    %vm842 = vcmp.eq.s32.totalorder %v589, %v778
    %vm843 = vcmp.eq.s32.totalorder %v589, %v779
    %vm844 = vcmp.eq.s32.totalorder %v589, %v780
    %vm845 = vcmp.eq.s32.totalorder %v589, %v781
    %vm846 = vcmp.eq.s32.totalorder %v589, %v782
    %vm847 = vcmp.eq.s32.totalorder %v589, %v783
    %vm848 = vcmp.eq.s32.totalorder %v589, %v784
    %vm849 = vcmp.eq.s32.totalorder %v589, %v785
    %v852 = vperm.slane %v561, 0
    %v853 = vperm.slane %v561, 1
    %v854 = vperm.slane %v561, 2
    %v855 = vperm.slane %v561, 3
    %v856 = vperm.slane %v561, 4
    %v857 = vperm.slane %v561, 5
    %v858 = vperm.slane %v561, 6
    %v859 = vperm.slane %v561, 7
    %v860 = vperm.slane %v562, 0
    %v861 = vperm.slane %v562, 1
    %v862 = vperm.slane %v562, 2
    %v863 = vperm.slane %v562, 3
    %v864 = vperm.slane %v562, 4
    %v865 = vperm.slane %v562, 5
    %v866 = vperm.slane %v562, 6
    %v867 = vperm.slane %v562, 7
    %v884 = vsel %vm786, %v852, 0.0
    %v885 = vsel %vm787, %v853, 0.0
    %v886 = vsel %vm788, %v854, 0.0
    %v887 = vsel %vm789, %v855, 0.0
    %v888 = vsel %vm790, %v856, 0.0
    %v889 = vsel %vm791, %v857, 0.0
    %v890 = vsel %vm792, %v858, 0.0
    %v891 = vsel %vm793, %v859, 0.0
    %v892 = vsel %vm794, %v860, 0.0
    %v893 = vsel %vm795, %v861, 0.0
    %v894 = vsel %vm796, %v862, 0.0
    %v895 = vsel %vm797, %v863, 0.0
    %v896 = vsel %vm798, %v864, 0.0
    %v897 = vsel %vm799, %v865, 0.0
    %v898 = vsel %vm800, %v866, 0.0
    %v899 = vsel %vm801, %v867, 0.0
    %v900 = vsel %vm802, %v852, 0.0
    %v901 = vsel %vm803, %v853, 0.0
    %v902 = vsel %vm804, %v854, 0.0
    %v903 = vsel %vm805, %v855, 0.0
    %v904 = vsel %vm806, %v856, 0.0
    %v905 = vsel %vm807, %v857, 0.0
    %v906 = vsel %vm808, %v858, 0.0
    %v907 = vsel %vm809, %v859, 0.0
    %v908 = vsel %vm810, %v860, 0.0
    %v909 = vsel %vm811, %v861, 0.0
    %v910 = vsel %vm812, %v862, 0.0
    %v911 = vsel %vm813, %v863, 0.0
    %v912 = vsel %vm814, %v864, 0.0
    %v913 = vsel %vm815, %v865, 0.0
    %v914 = vsel %vm816, %v866, 0.0
    %v915 = vsel %vm817, %v867, 0.0
    %v916 = vsel %vm818, %v852, 0.0
    %v917 = vsel %vm819, %v853, 0.0
    %v918 = vsel %vm820, %v854, 0.0
    %v919 = vsel %vm821, %v855, 0.0
    %v920 = vsel %vm822, %v856, 0.0
    %v921 = vsel %vm823, %v857, 0.0
    %v922 = vsel %vm824, %v858, 0.0
    %v923 = vsel %vm825, %v859, 0.0
    %v924 = vsel %vm826, %v860, 0.0
    %v925 = vsel %vm827, %v861, 0.0
    %v926 = vsel %vm828, %v862, 0.0
    %v927 = vsel %vm829, %v863, 0.0
    %v928 = vsel %vm830, %v864, 0.0
    %v929 = vsel %vm831, %v865, 0.0
    %v930 = vsel %vm832, %v866, 0.0
    %v931 = vsel %vm833, %v867, 0.0
    %v932 = vsel %vm834, %v852, 0.0
    %v933 = vsel %vm835, %v853, 0.0
    %v934 = vsel %vm836, %v854, 0.0
    %v935 = vsel %vm837, %v855, 0.0
    %v936 = vsel %vm838, %v856, 0.0
    %v937 = vsel %vm839, %v857, 0.0
    %v938 = vsel %vm840, %v858, 0.0
    %v939 = vsel %vm841, %v859, 0.0
    %v940 = vsel %vm842, %v860, 0.0
    %v941 = vsel %vm843, %v861, 0.0
    %v942 = vsel %vm844, %v862, 0.0
    %v943 = vsel %vm845, %v863, 0.0
    %v944 = vsel %vm846, %v864, 0.0
    %v945 = vsel %vm847, %v865, 0.0
    %v946 = vsel %vm848, %v866, 0.0
    %v947 = vsel %vm849, %v867, 0.0
    %v948 = vadd.f32 %v706, %v884
    %v949 = vadd.f32 %v707, %v885
    %v950 = vadd.f32 %v708, %v886
    %v951 = vadd.f32 %v709, %v887
    %v952 = vadd.f32 %v710, %v888
    %v953 = vadd.f32 %v711, %v889
    %v954 = vadd.f32 %v712, %v890
    %v955 = vadd.f32 %v713, %v891
    %v956 = vadd.f32 %v714, %v892
    %v957 = vadd.f32 %v715, %v893
    %v958 = vadd.f32 %v716, %v894
    %v959 = vadd.f32 %v717, %v895
    %v960 = vadd.f32 %v718, %v896
    %v961 = vadd.f32 %v719, %v897
    %v962 = vadd.f32 %v720, %v898
    %v963 = vadd.f32 %v721, %v899
    %v964 = vadd.f32 %v722, %v900
    %v965 = vadd.f32 %v723, %v901
    %v966 = vadd.f32 %v724, %v902
    %v967 = vadd.f32 %v725, %v903
    %v968 = vadd.f32 %v726, %v904
    %v969 = vadd.f32 %v727, %v905
    %v970 = vadd.f32 %v728, %v906
    %v971 = vadd.f32 %v729, %v907
    %v972 = vadd.f32 %v730, %v908
    %v973 = vadd.f32 %v731, %v909
    %v974 = vadd.f32 %v732, %v910
    %v975 = vadd.f32 %v733, %v911
    %v976 = vadd.f32 %v734, %v912
    %v977 = vadd.f32 %v735, %v913
    %v978 = vadd.f32 %v736, %v914
    %v979 = vadd.f32 %v737, %v915
    %v980 = vadd.f32 %v738, %v916
    %v981 = vadd.f32 %v739, %v917
    %v982 = vadd.f32 %v740, %v918
    %v983 = vadd.f32 %v741, %v919
    %v984 = vadd.f32 %v742, %v920
    %v985 = vadd.f32 %v743, %v921
    %v986 = vadd.f32 %v744, %v922
    %v987 = vadd.f32 %v745, %v923
    %v988 = vadd.f32 %v746, %v924
    %v989 = vadd.f32 %v747, %v925
    %v990 = vadd.f32 %v748, %v926
    %v991 = vadd.f32 %v749, %v927
    %v992 = vadd.f32 %v750, %v928
    %v993 = vadd.f32 %v751, %v929
    %v994 = vadd.f32 %v752, %v930
    %v995 = vadd.f32 %v753, %v931
    %v996 = vadd.f32 %v754, %v932
    %v997 = vadd.f32 %v755, %v933
    %v998 = vadd.f32 %v756, %v934
    %v999 = vadd.f32 %v757, %v935
    %v1000 = vadd.f32 %v758, %v936
    %v1001 = vadd.f32 %v759, %v937
    %v1002 = vadd.f32 %v760, %v938
    %v1003 = vadd.f32 %v761, %v939
    %v1004 = vadd.f32 %v762, %v940
    %v1005 = vadd.f32 %v763, %v941
    %v1006 = vadd.f32 %v764, %v942
    %v1007 = vadd.f32 %v765, %v943
    %v1008 = vadd.f32 %v766, %v944
    %v1009 = vadd.f32 %v767, %v945
    %v1010 = vadd.f32 %v768, %v946
    %v1011 = vadd.f32 %v769, %v947
    %v1012 = vld [vmem:[#allocation9] sm:$0xff]
    %v1013 = vld [vmem:[#allocation9 + $0x8] sm:$0xff]
    %vm1014 = vcmask 261120
    %v1016 = vsel %vm1014, %v1012, 0
    %v1019 = vsel %vm1014, %v1013, 0
    %1021 = vmatpush.msra.mxu0 0.0
    %1022 = vmatpush.msra.mxu0 0.0
    %1023 = vmatpush.msra.mxu0 0.0
    %1024 = vmatpush.msra.mxu0 0.0
    %1025 = vmatpush.msra.mxu0 0.0
    %1026 = vmatpush.msra.mxu0 0.0
    %1027 = vmatpush.msra.mxu0 0.0
    %1028 = vmatpush.msra.mxu0 0.0
    %1029 = vmatpush.msra.mxu0 0.0
    %1030 = vmatpush.msra.mxu0 0.0
    %1031 = vmatpush.msra.mxu0 0.0
    %1032 = vmatpush.msra.mxu0 0.0
    %1033 = vmatpush.msra.mxu0 %v996
    %1034 = vmatpush.msra.mxu0 %v980
    %1035 = vmatpush.msra.mxu0 %v964
    %1036 = vmatpush.msra.mxu0 %v948
    %1037 = vmatmul.f32.gmra.mxu0 %v1016
    %v1038 = vpop.f32.mrf.mxu0
    %v1039 = vadd.f32 0.0, %v1038
    %1040 = vmatmul.f32.gmra.mxu0 %v1019
    %v1041 = vpop.f32.mrf.mxu0
    %v1042 = vadd.f32 0.0, %v1041
    %1043 = vdwg.mxu0
    %1044 = vmatpush.msra.mxu0 0.0
    %1045 = vmatpush.msra.mxu0 0.0
    %1046 = vmatpush.msra.mxu0 0.0
    %1047 = vmatpush.msra.mxu0 0.0
    %1048 = vmatpush.msra.mxu0 0.0
    %1049 = vmatpush.msra.mxu0 0.0
    %1050 = vmatpush.msra.mxu0 0.0
    %1051 = vmatpush.msra.mxu0 0.0
    %1052 = vmatpush.msra.mxu0 0.0
    %1053 = vmatpush.msra.mxu0 0.0
    %1054 = vmatpush.msra.mxu0 0.0
    %1055 = vmatpush.msra.mxu0 0.0
    %1056 = vmatpush.msra.mxu0 %v997
    %1057 = vmatpush.msra.mxu0 %v981
    %1058 = vmatpush.msra.mxu0 %v965
    %1059 = vmatpush.msra.mxu0 %v949
    %1060 = vmatmul.f32.gmra.mxu0 %v1016
    %v1061 = vpop.f32.mrf.mxu0
    %v1062 = vadd.f32 0.0, %v1061
    %1063 = vmatmul.f32.gmra.mxu0 %v1019
    %v1064 = vpop.f32.mrf.mxu0
    %v1065 = vadd.f32 0.0, %v1064
    %1066 = vdwg.mxu0
    %1067 = vmatpush.msra.mxu0 0.0
    %1068 = vmatpush.msra.mxu0 0.0
    %1069 = vmatpush.msra.mxu0 0.0
    %1070 = vmatpush.msra.mxu0 0.0
    %1071 = vmatpush.msra.mxu0 0.0
    %1072 = vmatpush.msra.mxu0 0.0
    %1073 = vmatpush.msra.mxu0 0.0
    %1074 = vmatpush.msra.mxu0 0.0
    %1075 = vmatpush.msra.mxu0 0.0
    %1076 = vmatpush.msra.mxu0 0.0
    %1077 = vmatpush.msra.mxu0 0.0
    %1078 = vmatpush.msra.mxu0 0.0
    %1079 = vmatpush.msra.mxu0 %v998
    %1080 = vmatpush.msra.mxu0 %v982
    %1081 = vmatpush.msra.mxu0 %v966
    %1082 = vmatpush.msra.mxu0 %v950
    %1083 = vmatmul.f32.gmra.mxu0 %v1016
    %v1084 = vpop.f32.mrf.mxu0
    %v1085 = vadd.f32 0.0, %v1084
    %1086 = vmatmul.f32.gmra.mxu0 %v1019
    %v1087 = vpop.f32.mrf.mxu0
    %v1088 = vadd.f32 0.0, %v1087
    %1089 = vdwg.mxu0
    %1090 = vmatpush.msra.mxu0 0.0
    %1091 = vmatpush.msra.mxu0 0.0
    %1092 = vmatpush.msra.mxu0 0.0
    %1093 = vmatpush.msra.mxu0 0.0
    %1094 = vmatpush.msra.mxu0 0.0
    %1095 = vmatpush.msra.mxu0 0.0
    %1096 = vmatpush.msra.mxu0 0.0
    %1097 = vmatpush.msra.mxu0 0.0
    %1098 = vmatpush.msra.mxu0 0.0
    %1099 = vmatpush.msra.mxu0 0.0
    %1100 = vmatpush.msra.mxu0 0.0
    %1101 = vmatpush.msra.mxu0 0.0
    %1102 = vmatpush.msra.mxu0 %v999
    %1103 = vmatpush.msra.mxu0 %v983
    %1104 = vmatpush.msra.mxu0 %v967
    %1105 = vmatpush.msra.mxu0 %v951
    %1106 = vmatmul.f32.gmra.mxu0 %v1016
    %v1107 = vpop.f32.mrf.mxu0
    %v1108 = vadd.f32 0.0, %v1107
    %1109 = vmatmul.f32.gmra.mxu0 %v1019
    %v1110 = vpop.f32.mrf.mxu0
    %v1111 = vadd.f32 0.0, %v1110
    %1112 = vdwg.mxu0
    %1113 = vmatpush.msra.mxu0 0.0
    %1114 = vmatpush.msra.mxu0 0.0
    %1115 = vmatpush.msra.mxu0 0.0
    %1116 = vmatpush.msra.mxu0 0.0
    %1117 = vmatpush.msra.mxu0 0.0
    %1118 = vmatpush.msra.mxu0 0.0
    %1119 = vmatpush.msra.mxu0 0.0
    %1120 = vmatpush.msra.mxu0 0.0
    %1121 = vmatpush.msra.mxu0 0.0
    %1122 = vmatpush.msra.mxu0 0.0
    %1123 = vmatpush.msra.mxu0 0.0
    %1124 = vmatpush.msra.mxu0 0.0
    %1125 = vmatpush.msra.mxu0 %v1000
    %1126 = vmatpush.msra.mxu0 %v984
    %1127 = vmatpush.msra.mxu0 %v968
    %1128 = vmatpush.msra.mxu0 %v952
    %1129 = vmatmul.f32.gmra.mxu0 %v1016
    %v1130 = vpop.f32.mrf.mxu0
    %v1131 = vadd.f32 0.0, %v1130
    %1132 = vmatmul.f32.gmra.mxu0 %v1019
    %v1133 = vpop.f32.mrf.mxu0
    %v1134 = vadd.f32 0.0, %v1133
    %1135 = vdwg.mxu0
    %1136 = vmatpush.msra.mxu0 0.0
    %1137 = vmatpush.msra.mxu0 0.0
    %1138 = vmatpush.msra.mxu0 0.0
    %1139 = vmatpush.msra.mxu0 0.0
    %1140 = vmatpush.msra.mxu0 0.0
    %1141 = vmatpush.msra.mxu0 0.0
    %1142 = vmatpush.msra.mxu0 0.0
    %1143 = vmatpush.msra.mxu0 0.0
    %1144 = vmatpush.msra.mxu0 0.0
    %1145 = vmatpush.msra.mxu0 0.0
    %1146 = vmatpush.msra.mxu0 0.0
    %1147 = vmatpush.msra.mxu0 0.0
    %1148 = vmatpush.msra.mxu0 %v1001
    %1149 = vmatpush.msra.mxu0 %v985
    %1150 = vmatpush.msra.mxu0 %v969
    %1151 = vmatpush.msra.mxu0 %v953
    %1152 = vmatmul.f32.gmra.mxu0 %v1016
    %v1153 = vpop.f32.mrf.mxu0
    %v1154 = vadd.f32 0.0, %v1153
    %1155 = vmatmul.f32.gmra.mxu0 %v1019
    %v1156 = vpop.f32.mrf.mxu0
    %v1157 = vadd.f32 0.0, %v1156
    %1158 = vdwg.mxu0
    %1159 = vmatpush.msra.mxu0 0.0
    %1160 = vmatpush.msra.mxu0 0.0
    %1161 = vmatpush.msra.mxu0 0.0
    %1162 = vmatpush.msra.mxu0 0.0
    %1163 = vmatpush.msra.mxu0 0.0
    %1164 = vmatpush.msra.mxu0 0.0
    %1165 = vmatpush.msra.mxu0 0.0
    %1166 = vmatpush.msra.mxu0 0.0
    %1167 = vmatpush.msra.mxu0 0.0
    %1168 = vmatpush.msra.mxu0 0.0
    %1169 = vmatpush.msra.mxu0 0.0
    %1170 = vmatpush.msra.mxu0 0.0
    %1171 = vmatpush.msra.mxu0 %v1002
    %1172 = vmatpush.msra.mxu0 %v986
    %1173 = vmatpush.msra.mxu0 %v970
    %1174 = vmatpush.msra.mxu0 %v954
    %1175 = vmatmul.f32.gmra.mxu0 %v1016
    %v1176 = vpop.f32.mrf.mxu0
    %v1177 = vadd.f32 0.0, %v1176
    %1178 = vmatmul.f32.gmra.mxu0 %v1019
    %v1179 = vpop.f32.mrf.mxu0
    %v1180 = vadd.f32 0.0, %v1179
    %1181 = vdwg.mxu0
    %1182 = vmatpush.msra.mxu0 0.0
    %1183 = vmatpush.msra.mxu0 0.0
    %1184 = vmatpush.msra.mxu0 0.0
    %1185 = vmatpush.msra.mxu0 0.0
    %1186 = vmatpush.msra.mxu0 0.0
    %1187 = vmatpush.msra.mxu0 0.0
    %1188 = vmatpush.msra.mxu0 0.0
    %1189 = vmatpush.msra.mxu0 0.0
    %1190 = vmatpush.msra.mxu0 0.0
    %1191 = vmatpush.msra.mxu0 0.0
    %1192 = vmatpush.msra.mxu0 0.0
    %1193 = vmatpush.msra.mxu0 0.0
    %1194 = vmatpush.msra.mxu0 %v1003
    %1195 = vmatpush.msra.mxu0 %v987
    %1196 = vmatpush.msra.mxu0 %v971
    %1197 = vmatpush.msra.mxu0 %v955
    %1198 = vmatmul.f32.gmra.mxu0 %v1016
    %v1199 = vpop.f32.mrf.mxu0
    %v1200 = vadd.f32 0.0, %v1199
    %1201 = vmatmul.f32.gmra.mxu0 %v1019
    %v1202 = vpop.f32.mrf.mxu0
    %v1203 = vadd.f32 0.0, %v1202
    %1204 = vdwg.mxu0
    %1205 = vmatpush.msra.mxu0 0.0
    %1206 = vmatpush.msra.mxu0 0.0
    %1207 = vmatpush.msra.mxu0 0.0
    %1208 = vmatpush.msra.mxu0 0.0
    %1209 = vmatpush.msra.mxu0 0.0
    %1210 = vmatpush.msra.mxu0 0.0
    %1211 = vmatpush.msra.mxu0 0.0
    %1212 = vmatpush.msra.mxu0 0.0
    %1213 = vmatpush.msra.mxu0 0.0
    %1214 = vmatpush.msra.mxu0 0.0
    %1215 = vmatpush.msra.mxu0 0.0
    %1216 = vmatpush.msra.mxu0 0.0
    %1217 = vmatpush.msra.mxu0 %v1004
    %1218 = vmatpush.msra.mxu0 %v988
    %1219 = vmatpush.msra.mxu0 %v972
    %1220 = vmatpush.msra.mxu0 %v956
    %1221 = vmatmul.f32.gmra.mxu0 %v1016
    %v1222 = vpop.f32.mrf.mxu0
    %v1223 = vadd.f32 0.0, %v1222
    %1224 = vmatmul.f32.gmra.mxu0 %v1019
    %v1225 = vpop.f32.mrf.mxu0
    %v1226 = vadd.f32 0.0, %v1225
    %1227 = vdwg.mxu0
    %1228 = vmatpush.msra.mxu0 0.0
    %1229 = vmatpush.msra.mxu0 0.0
    %1230 = vmatpush.msra.mxu0 0.0
    %1231 = vmatpush.msra.mxu0 0.0
    %1232 = vmatpush.msra.mxu0 0.0
    %1233 = vmatpush.msra.mxu0 0.0
    %1234 = vmatpush.msra.mxu0 0.0
    %1235 = vmatpush.msra.mxu0 0.0
    %1236 = vmatpush.msra.mxu0 0.0
    %1237 = vmatpush.msra.mxu0 0.0
    %1238 = vmatpush.msra.mxu0 0.0
    %1239 = vmatpush.msra.mxu0 0.0
    %1240 = vmatpush.msra.mxu0 %v1005
    %1241 = vmatpush.msra.mxu0 %v989
    %1242 = vmatpush.msra.mxu0 %v973
    %1243 = vmatpush.msra.mxu0 %v957
    %1244 = vmatmul.f32.gmra.mxu0 %v1016
    %v1245 = vpop.f32.mrf.mxu0
    %v1246 = vadd.f32 0.0, %v1245
    %1247 = vmatmul.f32.gmra.mxu0 %v1019
    %v1248 = vpop.f32.mrf.mxu0
    %v1249 = vadd.f32 0.0, %v1248
    %1250 = vdwg.mxu0
    %1251 = vmatpush.msra.mxu0 0.0
    %1252 = vmatpush.msra.mxu0 0.0
    %1253 = vmatpush.msra.mxu0 0.0
    %1254 = vmatpush.msra.mxu0 0.0
    %1255 = vmatpush.msra.mxu0 0.0
    %1256 = vmatpush.msra.mxu0 0.0
    %1257 = vmatpush.msra.mxu0 0.0
    %1258 = vmatpush.msra.mxu0 0.0
    %1259 = vmatpush.msra.mxu0 0.0
    %1260 = vmatpush.msra.mxu0 0.0
    %1261 = vmatpush.msra.mxu0 0.0
    %1262 = vmatpush.msra.mxu0 0.0
    %1263 = vmatpush.msra.mxu0 %v1006
    %1264 = vmatpush.msra.mxu0 %v990
    %1265 = vmatpush.msra.mxu0 %v974
    %1266 = vmatpush.msra.mxu0 %v958
    %1267 = vmatmul.f32.gmra.mxu0 %v1016
    %v1268 = vpop.f32.mrf.mxu0
    %v1269 = vadd.f32 0.0, %v1268
    %1270 = vmatmul.f32.gmra.mxu0 %v1019
    %v1271 = vpop.f32.mrf.mxu0
    %v1272 = vadd.f32 0.0, %v1271
    %1273 = vdwg.mxu0
    %1274 = vmatpush.msra.mxu0 0.0
    %1275 = vmatpush.msra.mxu0 0.0
    %1276 = vmatpush.msra.mxu0 0.0
    %1277 = vmatpush.msra.mxu0 0.0
    %1278 = vmatpush.msra.mxu0 0.0
    %1279 = vmatpush.msra.mxu0 0.0
    %1280 = vmatpush.msra.mxu0 0.0
    %1281 = vmatpush.msra.mxu0 0.0
    %1282 = vmatpush.msra.mxu0 0.0
    %1283 = vmatpush.msra.mxu0 0.0
    %1284 = vmatpush.msra.mxu0 0.0
    %1285 = vmatpush.msra.mxu0 0.0
    %1286 = vmatpush.msra.mxu0 %v1007
    %1287 = vmatpush.msra.mxu0 %v991
    %1288 = vmatpush.msra.mxu0 %v975
    %1289 = vmatpush.msra.mxu0 %v959
    %1290 = vmatmul.f32.gmra.mxu0 %v1016
    %v1291 = vpop.f32.mrf.mxu0
    %v1292 = vadd.f32 0.0, %v1291
    %1293 = vmatmul.f32.gmra.mxu0 %v1019
    %v1294 = vpop.f32.mrf.mxu0
    %v1295 = vadd.f32 0.0, %v1294
    %1296 = vdwg.mxu0
    %1297 = vmatpush.msra.mxu0 0.0
    %1298 = vmatpush.msra.mxu0 0.0
    %1299 = vmatpush.msra.mxu0 0.0
    %1300 = vmatpush.msra.mxu0 0.0
    %1301 = vmatpush.msra.mxu0 0.0
    %1302 = vmatpush.msra.mxu0 0.0
    %1303 = vmatpush.msra.mxu0 0.0
    %1304 = vmatpush.msra.mxu0 0.0
    %1305 = vmatpush.msra.mxu0 0.0
    %1306 = vmatpush.msra.mxu0 0.0
    %1307 = vmatpush.msra.mxu0 0.0
    %1308 = vmatpush.msra.mxu0 0.0
    %1309 = vmatpush.msra.mxu0 %v1008
    %1310 = vmatpush.msra.mxu0 %v992
    %1311 = vmatpush.msra.mxu0 %v976
    %1312 = vmatpush.msra.mxu0 %v960
    %1313 = vmatmul.f32.gmra.mxu0 %v1016
    %v1314 = vpop.f32.mrf.mxu0
    %v1315 = vadd.f32 0.0, %v1314
    %1316 = vmatmul.f32.gmra.mxu0 %v1019
    %v1317 = vpop.f32.mrf.mxu0
    %v1318 = vadd.f32 0.0, %v1317
    %1319 = vdwg.mxu0
    %1320 = vmatpush.msra.mxu0 0.0
    %1321 = vmatpush.msra.mxu0 0.0
    %1322 = vmatpush.msra.mxu0 0.0
    %1323 = vmatpush.msra.mxu0 0.0
    %1324 = vmatpush.msra.mxu0 0.0
    %1325 = vmatpush.msra.mxu0 0.0
    %1326 = vmatpush.msra.mxu0 0.0
    %1327 = vmatpush.msra.mxu0 0.0
    %1328 = vmatpush.msra.mxu0 0.0
    %1329 = vmatpush.msra.mxu0 0.0
    %1330 = vmatpush.msra.mxu0 0.0
    %1331 = vmatpush.msra.mxu0 0.0
    %1332 = vmatpush.msra.mxu0 %v1009
    %1333 = vmatpush.msra.mxu0 %v993
    %1334 = vmatpush.msra.mxu0 %v977
    %1335 = vmatpush.msra.mxu0 %v961
    %1336 = vmatmul.f32.gmra.mxu0 %v1016
    %v1337 = vpop.f32.mrf.mxu0
    %v1338 = vadd.f32 0.0, %v1337
    %1339 = vmatmul.f32.gmra.mxu0 %v1019
    %v1340 = vpop.f32.mrf.mxu0
    %v1341 = vadd.f32 0.0, %v1340
    %1342 = vdwg.mxu0
    %1343 = vmatpush.msra.mxu0 0.0
    %1344 = vmatpush.msra.mxu0 0.0
    %1345 = vmatpush.msra.mxu0 0.0
    %1346 = vmatpush.msra.mxu0 0.0
    %1347 = vmatpush.msra.mxu0 0.0
    %1348 = vmatpush.msra.mxu0 0.0
    %1349 = vmatpush.msra.mxu0 0.0
    %1350 = vmatpush.msra.mxu0 0.0
    %1351 = vmatpush.msra.mxu0 0.0
    %1352 = vmatpush.msra.mxu0 0.0
    %1353 = vmatpush.msra.mxu0 0.0
    %1354 = vmatpush.msra.mxu0 0.0
    %1355 = vmatpush.msra.mxu0 %v1010
    %1356 = vmatpush.msra.mxu0 %v994
    %1357 = vmatpush.msra.mxu0 %v978
    %1358 = vmatpush.msra.mxu0 %v962
    %1359 = vmatmul.f32.gmra.mxu0 %v1016
    %v1360 = vpop.f32.mrf.mxu0
    %v1361 = vadd.f32 0.0, %v1360
    %1362 = vmatmul.f32.gmra.mxu0 %v1019
    %v1363 = vpop.f32.mrf.mxu0
    %v1364 = vadd.f32 0.0, %v1363
    %1365 = vdwg.mxu0
    %1366 = vmatpush.msra.mxu0 0.0
    %1367 = vmatpush.msra.mxu0 0.0
    %1368 = vmatpush.msra.mxu0 0.0
    %1369 = vmatpush.msra.mxu0 0.0
    %1370 = vmatpush.msra.mxu0 0.0
    %1371 = vmatpush.msra.mxu0 0.0
    %1372 = vmatpush.msra.mxu0 0.0
    %1373 = vmatpush.msra.mxu0 0.0
    %1374 = vmatpush.msra.mxu0 0.0
    %1375 = vmatpush.msra.mxu0 0.0
    %1376 = vmatpush.msra.mxu0 0.0
    %1377 = vmatpush.msra.mxu0 0.0
    %1378 = vmatpush.msra.mxu0 %v1011
    %1379 = vmatpush.msra.mxu0 %v995
    %1380 = vmatpush.msra.mxu0 %v979
    %1381 = vmatpush.msra.mxu0 %v963
    %1382 = vmatmul.f32.gmra.mxu0 %v1016
    %v1383 = vpop.f32.mrf.mxu0
    %v1384 = vadd.f32 0.0, %v1383
    %1385 = vmatmul.f32.gmra.mxu0 %v1019
    %v1386 = vpop.f32.mrf.mxu0
    %v1387 = vadd.f32 0.0, %v1386
    %1388 = vdwg.mxu0
    %v1389 = vld [vmem:[#allocation21] sm:$0xff]
    %v1390 = vld [vmem:[#allocation21 + $0x8] sm:$0xff]
    %v1391 = vsub.f32 1.0, %v567
    %v1392 = vsub.f32 1.0, %v568
    %v1393 = vmul.f32 %v1389, %v1391
    %v1394 = vmul.f32 %v1390, %v1392
    %v1395 = vmul.f32 %v1389, %v567
    %v1396 = vmul.f32 %v1390, %v568
    %v1397 = vperm.slane %v563, 0
    %v1398 = vperm.slane %v563, 1
    %v1399 = vperm.slane %v563, 2
    %v1400 = vperm.slane %v563, 3
    %v1401 = vperm.slane %v563, 4
    %v1402 = vperm.slane %v563, 5
    %v1403 = vperm.slane %v563, 6
    %v1404 = vperm.slane %v563, 7
    %v1405 = vperm.slane %v564, 0
    %v1406 = vperm.slane %v564, 1
    %v1407 = vperm.slane %v564, 2
    %v1408 = vperm.slane %v564, 3
    %v1409 = vperm.slane %v564, 4
    %v1410 = vperm.slane %v564, 5
    %v1411 = vperm.slane %v564, 6
    %v1412 = vperm.slane %v564, 7
    %vm1413 = vcmp.eq.s32.totalorder %v586, %v1397
    %vm1414 = vcmp.eq.s32.totalorder %v586, %v1398
    %vm1415 = vcmp.eq.s32.totalorder %v586, %v1399
    %vm1416 = vcmp.eq.s32.totalorder %v586, %v1400
    %vm1417 = vcmp.eq.s32.totalorder %v586, %v1401
    %vm1418 = vcmp.eq.s32.totalorder %v586, %v1402
    %vm1419 = vcmp.eq.s32.totalorder %v586, %v1403
    %vm1420 = vcmp.eq.s32.totalorder %v586, %v1404
    %vm1421 = vcmp.eq.s32.totalorder %v586, %v1405
    %vm1422 = vcmp.eq.s32.totalorder %v586, %v1406
    %vm1423 = vcmp.eq.s32.totalorder %v586, %v1407
    %vm1424 = vcmp.eq.s32.totalorder %v586, %v1408
    %vm1425 = vcmp.eq.s32.totalorder %v586, %v1409
    %vm1426 = vcmp.eq.s32.totalorder %v586, %v1410
    %vm1427 = vcmp.eq.s32.totalorder %v586, %v1411
    %vm1428 = vcmp.eq.s32.totalorder %v586, %v1412
    %vm1429 = vcmp.eq.s32.totalorder %v587, %v1397
    %vm1430 = vcmp.eq.s32.totalorder %v587, %v1398
    %vm1431 = vcmp.eq.s32.totalorder %v587, %v1399
    %vm1432 = vcmp.eq.s32.totalorder %v587, %v1400
    %vm1433 = vcmp.eq.s32.totalorder %v587, %v1401
    %vm1434 = vcmp.eq.s32.totalorder %v587, %v1402
    %vm1435 = vcmp.eq.s32.totalorder %v587, %v1403
    %vm1436 = vcmp.eq.s32.totalorder %v587, %v1404
    %vm1437 = vcmp.eq.s32.totalorder %v587, %v1405
    %vm1438 = vcmp.eq.s32.totalorder %v587, %v1406
    %vm1439 = vcmp.eq.s32.totalorder %v587, %v1407
    %vm1440 = vcmp.eq.s32.totalorder %v587, %v1408
    %vm1441 = vcmp.eq.s32.totalorder %v587, %v1409
    %vm1442 = vcmp.eq.s32.totalorder %v587, %v1410
    %vm1443 = vcmp.eq.s32.totalorder %v587, %v1411
    %vm1444 = vcmp.eq.s32.totalorder %v587, %v1412
    %v1447 = vperm.slane %v1393, 0
    %v1448 = vperm.slane %v1393, 1
    %v1449 = vperm.slane %v1393, 2
    %v1450 = vperm.slane %v1393, 3
    %v1451 = vperm.slane %v1393, 4
    %v1452 = vperm.slane %v1393, 5
    %v1453 = vperm.slane %v1393, 6
    %v1454 = vperm.slane %v1393, 7
    %v1455 = vperm.slane %v1394, 0
    %v1456 = vperm.slane %v1394, 1
    %v1457 = vperm.slane %v1394, 2
    %v1458 = vperm.slane %v1394, 3
    %v1459 = vperm.slane %v1394, 4
    %v1460 = vperm.slane %v1394, 5
    %v1461 = vperm.slane %v1394, 6
    %v1462 = vperm.slane %v1394, 7
    %v1479 = vsel %vm1413, %v1447, 0.0
    %v1480 = vsel %vm1414, %v1448, 0.0
    %v1481 = vsel %vm1415, %v1449, 0.0
    %v1482 = vsel %vm1416, %v1450, 0.0
    %v1483 = vsel %vm1417, %v1451, 0.0
    %v1484 = vsel %vm1418, %v1452, 0.0
    %v1485 = vsel %vm1419, %v1453, 0.0
    %v1486 = vsel %vm1420, %v1454, 0.0
    %v1487 = vsel %vm1421, %v1455, 0.0
    %v1488 = vsel %vm1422, %v1456, 0.0
    %v1489 = vsel %vm1423, %v1457, 0.0
    %v1490 = vsel %vm1424, %v1458, 0.0
    %v1491 = vsel %vm1425, %v1459, 0.0
    %v1492 = vsel %vm1426, %v1460, 0.0
    %v1493 = vsel %vm1427, %v1461, 0.0
    %v1494 = vsel %vm1428, %v1462, 0.0
    %v1495 = vsel %vm1429, %v1447, 0.0
    %v1496 = vsel %vm1430, %v1448, 0.0
    %v1497 = vsel %vm1431, %v1449, 0.0
    %v1498 = vsel %vm1432, %v1450, 0.0
    %v1499 = vsel %vm1433, %v1451, 0.0
    %v1500 = vsel %vm1434, %v1452, 0.0
    %v1501 = vsel %vm1435, %v1453, 0.0
    %v1502 = vsel %vm1436, %v1454, 0.0
    %v1503 = vsel %vm1437, %v1455, 0.0
    %v1504 = vsel %vm1438, %v1456, 0.0
    %v1505 = vsel %vm1439, %v1457, 0.0
    %v1506 = vsel %vm1440, %v1458, 0.0
    %v1507 = vsel %vm1441, %v1459, 0.0
    %v1508 = vsel %vm1442, %v1460, 0.0
    %v1509 = vsel %vm1443, %v1461, 0.0
    %v1510 = vsel %vm1444, %v1462, 0.0
    %v1511 = vperm.slane %v582, 0
    %v1512 = vperm.slane %v582, 1
    %v1513 = vperm.slane %v582, 2
    %v1514 = vperm.slane %v582, 3
    %v1515 = vperm.slane %v582, 4
    %v1516 = vperm.slane %v582, 5
    %v1517 = vperm.slane %v582, 6
    %v1518 = vperm.slane %v582, 7
    %v1519 = vperm.slane %v584, 0
    %v1520 = vperm.slane %v584, 1
    %v1521 = vperm.slane %v584, 2
    %v1522 = vperm.slane %v584, 3
    %v1523 = vperm.slane %v584, 4
    %v1524 = vperm.slane %v584, 5
    %v1525 = vperm.slane %v584, 6
    %v1526 = vperm.slane %v584, 7
    %vm1527 = vcmp.eq.s32.totalorder %v586, %v1511
    %vm1528 = vcmp.eq.s32.totalorder %v586, %v1512
    %vm1529 = vcmp.eq.s32.totalorder %v586, %v1513
    %vm1530 = vcmp.eq.s32.totalorder %v586, %v1514
    %vm1531 = vcmp.eq.s32.totalorder %v586, %v1515
    %vm1532 = vcmp.eq.s32.totalorder %v586, %v1516
    %vm1533 = vcmp.eq.s32.totalorder %v586, %v1517
    %vm1534 = vcmp.eq.s32.totalorder %v586, %v1518
    %vm1535 = vcmp.eq.s32.totalorder %v586, %v1519
    %vm1536 = vcmp.eq.s32.totalorder %v586, %v1520
    %vm1537 = vcmp.eq.s32.totalorder %v586, %v1521
    %vm1538 = vcmp.eq.s32.totalorder %v586, %v1522
    %vm1539 = vcmp.eq.s32.totalorder %v586, %v1523
    %vm1540 = vcmp.eq.s32.totalorder %v586, %v1524
    %vm1541 = vcmp.eq.s32.totalorder %v586, %v1525
    %vm1542 = vcmp.eq.s32.totalorder %v586, %v1526
    %vm1543 = vcmp.eq.s32.totalorder %v587, %v1511
    %vm1544 = vcmp.eq.s32.totalorder %v587, %v1512
    %vm1545 = vcmp.eq.s32.totalorder %v587, %v1513
    %vm1546 = vcmp.eq.s32.totalorder %v587, %v1514
    %vm1547 = vcmp.eq.s32.totalorder %v587, %v1515
    %vm1548 = vcmp.eq.s32.totalorder %v587, %v1516
    %vm1549 = vcmp.eq.s32.totalorder %v587, %v1517
    %vm1550 = vcmp.eq.s32.totalorder %v587, %v1518
    %vm1551 = vcmp.eq.s32.totalorder %v587, %v1519
    %vm1552 = vcmp.eq.s32.totalorder %v587, %v1520
    %vm1553 = vcmp.eq.s32.totalorder %v587, %v1521
    %vm1554 = vcmp.eq.s32.totalorder %v587, %v1522
    %vm1555 = vcmp.eq.s32.totalorder %v587, %v1523
    %vm1556 = vcmp.eq.s32.totalorder %v587, %v1524
    %vm1557 = vcmp.eq.s32.totalorder %v587, %v1525
    %vm1558 = vcmp.eq.s32.totalorder %v587, %v1526
    %v1561 = vperm.slane %v1395, 0
    %v1562 = vperm.slane %v1395, 1
    %v1563 = vperm.slane %v1395, 2
    %v1564 = vperm.slane %v1395, 3
    %v1565 = vperm.slane %v1395, 4
    %v1566 = vperm.slane %v1395, 5
    %v1567 = vperm.slane %v1395, 6
    %v1568 = vperm.slane %v1395, 7
    %v1569 = vperm.slane %v1396, 0
    %v1570 = vperm.slane %v1396, 1
    %v1571 = vperm.slane %v1396, 2
    %v1572 = vperm.slane %v1396, 3
    %v1573 = vperm.slane %v1396, 4
    %v1574 = vperm.slane %v1396, 5
    %v1575 = vperm.slane %v1396, 6
    %v1576 = vperm.slane %v1396, 7
    %v1593 = vsel %vm1527, %v1561, 0.0
    %v1594 = vsel %vm1528, %v1562, 0.0
    %v1595 = vsel %vm1529, %v1563, 0.0
    %v1596 = vsel %vm1530, %v1564, 0.0
    %v1597 = vsel %vm1531, %v1565, 0.0
    %v1598 = vsel %vm1532, %v1566, 0.0
    %v1599 = vsel %vm1533, %v1567, 0.0
    %v1600 = vsel %vm1534, %v1568, 0.0
    %v1601 = vsel %vm1535, %v1569, 0.0
    %v1602 = vsel %vm1536, %v1570, 0.0
    %v1603 = vsel %vm1537, %v1571, 0.0
    %v1604 = vsel %vm1538, %v1572, 0.0
    %v1605 = vsel %vm1539, %v1573, 0.0
    %v1606 = vsel %vm1540, %v1574, 0.0
    %v1607 = vsel %vm1541, %v1575, 0.0
    %v1608 = vsel %vm1542, %v1576, 0.0
    %v1609 = vsel %vm1543, %v1561, 0.0
    %v1610 = vsel %vm1544, %v1562, 0.0
    %v1611 = vsel %vm1545, %v1563, 0.0
    %v1612 = vsel %vm1546, %v1564, 0.0
    %v1613 = vsel %vm1547, %v1565, 0.0
    %v1614 = vsel %vm1548, %v1566, 0.0
    %v1615 = vsel %vm1549, %v1567, 0.0
    %v1616 = vsel %vm1550, %v1568, 0.0
    %v1617 = vsel %vm1551, %v1569, 0.0
    %v1618 = vsel %vm1552, %v1570, 0.0
    %v1619 = vsel %vm1553, %v1571, 0.0
    %v1620 = vsel %vm1554, %v1572, 0.0
    %v1621 = vsel %vm1555, %v1573, 0.0
    %v1622 = vsel %vm1556, %v1574, 0.0
    %v1623 = vsel %vm1557, %v1575, 0.0
    %v1624 = vsel %vm1558, %v1576, 0.0
    %v1625 = vadd.f32 %v1479, %v1593
    %v1626 = vadd.f32 %v1480, %v1594
    %v1627 = vadd.f32 %v1481, %v1595
    %v1628 = vadd.f32 %v1482, %v1596
    %v1629 = vadd.f32 %v1483, %v1597
    %v1630 = vadd.f32 %v1484, %v1598
    %v1631 = vadd.f32 %v1485, %v1599
    %v1632 = vadd.f32 %v1486, %v1600
    %v1633 = vadd.f32 %v1487, %v1601
    %v1634 = vadd.f32 %v1488, %v1602
    %v1635 = vadd.f32 %v1489, %v1603
    %v1636 = vadd.f32 %v1490, %v1604
    %v1637 = vadd.f32 %v1491, %v1605
    %v1638 = vadd.f32 %v1492, %v1606
    %v1639 = vadd.f32 %v1493, %v1607
    %v1640 = vadd.f32 %v1494, %v1608
    %v1641 = vadd.f32 %v1495, %v1609
    %v1642 = vadd.f32 %v1496, %v1610
    %v1643 = vadd.f32 %v1497, %v1611
    %v1644 = vadd.f32 %v1498, %v1612
    %v1645 = vadd.f32 %v1499, %v1613
    %v1646 = vadd.f32 %v1500, %v1614
    %v1647 = vadd.f32 %v1501, %v1615
    %v1648 = vadd.f32 %v1502, %v1616
    %v1649 = vadd.f32 %v1503, %v1617
    %v1650 = vadd.f32 %v1504, %v1618
    %v1651 = vadd.f32 %v1505, %v1619
    %v1652 = vadd.f32 %v1506, %v1620
    %v1653 = vadd.f32 %v1507, %v1621
    %v1654 = vadd.f32 %v1508, %v1622
    %v1655 = vadd.f32 %v1509, %v1623
    %v1656 = vadd.f32 %v1510, %v1624
    %v1657 = vmul.f32 %v1625, %v1039
    %v1658 = vmul.f32 %v1626, %v1062
    %v1659 = vmul.f32 %v1627, %v1085
    %v1660 = vmul.f32 %v1628, %v1108
    %v1661 = vmul.f32 %v1629, %v1131
    %v1662 = vmul.f32 %v1630, %v1154
    %v1663 = vmul.f32 %v1631, %v1177
    %v1664 = vmul.f32 %v1632, %v1200
    %v1665 = vmul.f32 %v1633, %v1223
    %v1666 = vmul.f32 %v1634, %v1246
    %v1667 = vmul.f32 %v1635, %v1269
    %v1668 = vmul.f32 %v1636, %v1292
    %v1669 = vmul.f32 %v1637, %v1315
    %v1670 = vmul.f32 %v1638, %v1338
    %v1671 = vmul.f32 %v1639, %v1361
    %v1672 = vmul.f32 %v1640, %v1384
    %v1673 = vmul.f32 %v1641, %v1042
    %v1674 = vmul.f32 %v1642, %v1065
    %v1675 = vmul.f32 %v1643, %v1088
    %v1676 = vmul.f32 %v1644, %v1111
    %v1677 = vmul.f32 %v1645, %v1134
    %v1678 = vmul.f32 %v1646, %v1157
    %v1679 = vmul.f32 %v1647, %v1180
    %v1680 = vmul.f32 %v1648, %v1203
    %v1681 = vmul.f32 %v1649, %v1226
    %v1682 = vmul.f32 %v1650, %v1249
    %v1683 = vmul.f32 %v1651, %v1272
    %v1684 = vmul.f32 %v1652, %v1295
    %v1685 = vmul.f32 %v1653, %v1318
    %v1686 = vmul.f32 %v1654, %v1341
    %v1687 = vmul.f32 %v1655, %v1364
    %v1688 = vmul.f32 %v1656, %v1387
    %v1689 = vadd.f32 %v1657, %v1673
    %v1690 = vrot.slane %v1689, 4
    %v1691 = vadd.f32 %v1689, %v1690
    %v1692 = vrot.slane %v1691, 2
    %v1693 = vadd.f32 %v1691, %v1692
    %v1694 = vrot.slane %v1693, 1
    %v1695 = vadd.f32 %v1693, %v1694
    %v1696 = vadd.f32 %v1658, %v1674
    %v1697 = vrot.slane %v1696, 4
    %v1698 = vadd.f32 %v1696, %v1697
    %v1699 = vrot.slane %v1698, 2
    %v1700 = vadd.f32 %v1698, %v1699
    %v1701 = vrot.slane %v1700, 1
    %v1702 = vadd.f32 %v1700, %v1701
    %v1703 = vadd.f32 %v1659, %v1675
    %v1704 = vrot.slane %v1703, 4
    %v1705 = vadd.f32 %v1703, %v1704
    %v1706 = vrot.slane %v1705, 2
    %v1707 = vadd.f32 %v1705, %v1706
    %v1708 = vrot.slane %v1707, 1
    %v1709 = vadd.f32 %v1707, %v1708
    %v1710 = vadd.f32 %v1660, %v1676
    %v1711 = vrot.slane %v1710, 4
    %v1712 = vadd.f32 %v1710, %v1711
    %v1713 = vrot.slane %v1712, 2
    %v1714 = vadd.f32 %v1712, %v1713
    %v1715 = vrot.slane %v1714, 1
    %v1716 = vadd.f32 %v1714, %v1715
    %v1717 = vadd.f32 %v1661, %v1677
    %v1718 = vrot.slane %v1717, 4
    %v1719 = vadd.f32 %v1717, %v1718
    %v1720 = vrot.slane %v1719, 2
    %v1721 = vadd.f32 %v1719, %v1720
    %v1722 = vrot.slane %v1721, 1
    %v1723 = vadd.f32 %v1721, %v1722
    %v1724 = vadd.f32 %v1662, %v1678
    %v1725 = vrot.slane %v1724, 4
    %v1726 = vadd.f32 %v1724, %v1725
    %v1727 = vrot.slane %v1726, 2
    %v1728 = vadd.f32 %v1726, %v1727
    %v1729 = vrot.slane %v1728, 1
    %v1730 = vadd.f32 %v1728, %v1729
    %v1731 = vadd.f32 %v1663, %v1679
    %v1732 = vrot.slane %v1731, 4
    %v1733 = vadd.f32 %v1731, %v1732
    %v1734 = vrot.slane %v1733, 2
    %v1735 = vadd.f32 %v1733, %v1734
    %v1736 = vrot.slane %v1735, 1
    %v1737 = vadd.f32 %v1735, %v1736
    %v1738 = vadd.f32 %v1664, %v1680
    %v1739 = vrot.slane %v1738, 4
    %v1740 = vadd.f32 %v1738, %v1739
    %v1741 = vrot.slane %v1740, 2
    %v1742 = vadd.f32 %v1740, %v1741
    %v1743 = vrot.slane %v1742, 1
    %v1744 = vadd.f32 %v1742, %v1743
    %v1745 = vadd.f32 %v1665, %v1681
    %v1746 = vrot.slane %v1745, 4
    %v1747 = vadd.f32 %v1745, %v1746
    %v1748 = vrot.slane %v1747, 2
    %v1749 = vadd.f32 %v1747, %v1748
    %v1750 = vrot.slane %v1749, 1
    %v1751 = vadd.f32 %v1749, %v1750
    %v1752 = vadd.f32 %v1666, %v1682
    %v1753 = vrot.slane %v1752, 4
    %v1754 = vadd.f32 %v1752, %v1753
    %v1755 = vrot.slane %v1754, 2
    %v1756 = vadd.f32 %v1754, %v1755
    %v1757 = vrot.slane %v1756, 1
    %v1758 = vadd.f32 %v1756, %v1757
    %v1759 = vadd.f32 %v1667, %v1683
    %v1760 = vrot.slane %v1759, 4
    %v1761 = vadd.f32 %v1759, %v1760
    %v1762 = vrot.slane %v1761, 2
    %v1763 = vadd.f32 %v1761, %v1762
    %v1764 = vrot.slane %v1763, 1
    %v1765 = vadd.f32 %v1763, %v1764
    %v1766 = vadd.f32 %v1668, %v1684
    %v1767 = vrot.slane %v1766, 4
    %v1768 = vadd.f32 %v1766, %v1767
    %v1769 = vrot.slane %v1768, 2
    %v1770 = vadd.f32 %v1768, %v1769
    %v1771 = vrot.slane %v1770, 1
    %v1772 = vadd.f32 %v1770, %v1771
    %v1773 = vadd.f32 %v1669, %v1685
    %v1774 = vrot.slane %v1773, 4
    %v1775 = vadd.f32 %v1773, %v1774
    %v1776 = vrot.slane %v1775, 2
    %v1777 = vadd.f32 %v1775, %v1776
    %v1778 = vrot.slane %v1777, 1
    %v1779 = vadd.f32 %v1777, %v1778
    %v1780 = vadd.f32 %v1670, %v1686
    %v1781 = vrot.slane %v1780, 4
    %v1782 = vadd.f32 %v1780, %v1781
    %v1783 = vrot.slane %v1782, 2
    %v1784 = vadd.f32 %v1782, %v1783
    %v1785 = vrot.slane %v1784, 1
    %v1786 = vadd.f32 %v1784, %v1785
    %v1787 = vadd.f32 %v1671, %v1687
    %v1788 = vrot.slane %v1787, 4
    %v1789 = vadd.f32 %v1787, %v1788
    %v1790 = vrot.slane %v1789, 2
    %v1791 = vadd.f32 %v1789, %v1790
    %v1792 = vrot.slane %v1791, 1
    %v1793 = vadd.f32 %v1791, %v1792
    %v1794 = vadd.f32 %v1672, %v1688
    %v1795 = vrot.slane %v1794, 4
    %v1796 = vadd.f32 %v1794, %v1795
    %v1797 = vrot.slane %v1796, 2
    %v1798 = vadd.f32 %v1796, %v1797
    %v1799 = vrot.slane %v1798, 1
    %v1800 = vadd.f32 %v1798, %v1799
    %v1801 = vadd.f32 %v1695, %v1723
    %v1802 = vadd.f32 %v1702, %v1730
    %v1803 = vadd.f32 %v1709, %v1737
    %v1804 = vadd.f32 %v1716, %v1744
    %v1805 = vadd.f32 %v1801, %v1751
    %v1806 = vadd.f32 %v1802, %v1758
    %v1807 = vadd.f32 %v1803, %v1765
    %v1808 = vadd.f32 %v1804, %v1772
    %v1809 = vadd.f32 %v1805, %v1779
    %v1810 = vadd.f32 %v1806, %v1786
    %v1811 = vadd.f32 %v1807, %v1793
    %v1812 = vadd.f32 %v1808, %v1800
    %s1813 = sld [smem:[#allocation5]]
    %v1814 = vstv %s1813
    %v1815 = vadd.f32 %v1809, %v1814
    %v1816 = vadd.f32 %v1810, %v1814
    %v1817 = vadd.f32 %v1811, %v1814
    %v1818 = vadd.f32 %v1812, %v1814
    %vm1819 = vcmp.ge.f32.partialorder %v1815, 0.0
    %vm1820 = vcmp.ge.f32.partialorder %v1816, 0.0
    %vm1821 = vcmp.ge.f32.partialorder %v1817, 0.0
    %vm1822 = vcmp.ge.f32.partialorder %v1818, 0.0
    %v1823 = vmul.f32 %v1815, 0.2
    %v1824 = vmul.f32 %v1816, 0.2
    %v1825 = vmul.f32 %v1817, 0.2
    %v1826 = vmul.f32 %v1818, 0.2
    %v1827 = vsel %vm1819, %v1815, %v1823
    %v1828 = vsel %vm1820, %v1816, %v1824
    %v1829 = vsel %vm1821, %v1817, %v1825
    %v1830 = vsel %vm1822, %v1818, %v1826
    %v1835 = vrot.slane %v1828, 7
    %v1836 = vrot.slane %v1829, 6
    %v1837 = vrot.slane %v1830, 5
    %vm1838 = vcmask 1040384
    %v1839 = vsel %vm1838, %v1827, %v1835
    %vm1840 = vcmask 1042434
    %v1841 = vsel %vm1840, %v1836, %v1837
    %vm1842 = vcmask 1041408
    %v1843 = vsel %vm1842, %v1839, %v1841
    %v1845 = vlaneseq
    %vm1846 = vcmp.ge.s32.totalorder %v1845, 0
    %vm1847 = vcmp.lt.s32.totalorder %v1845, 512
    %vm1848 = vmand %vm1846, %vm1847
    %1849 = vst.msk [vmem:[#allocation23] sm:$0xf] %vm1848, %v1843
    // Predicated region
    $region98: #{tpu_custom_call.1} parent=1 // pred_check
      _
    $region99: #{tpu_custom_call.1} parent=1 // pred_check_branch
      %1851 = sbr.rel (0) target = $region101
    $region100: #{tpu_custom_call.1} parent=1 // pred_region
      %1853 = vsyncadd [#allocation8], 0
      %s1855 = sshll.u32 [#allocation23], 4
      %s1856 = int_to_ptr.vmem [resolvable:$true] %s1855
      %s1857 = sshll.u32 %s14, 4
      %s1858 = int_to_ptr.hbm [resolvable:$true] %s1857
      %1860 = dma.vmem_to_hbm [thread:$0]  %s1856, 64, %s1858, [#allocation8]
    $region101: #{tpu_custom_call.1} parent=1 // pred_fallthru
      _
    // Predicated region
    $region102: #{tpu_custom_call.1} parent=1 // pred_check
      _
    $region103: #{tpu_custom_call.1} parent=1 // pred_check_branch
      %1862 = sbr.rel (0) target = $region105
    $region104: #{tpu_custom_call.1} parent=1 // pred_region
      %1864 = dma.done [#allocation8], 64
    $region105: #{tpu_custom_call.1} parent=1 // pred_fallthru
      _
    %1865 = vsyncpa [#allocation7], 1
    %1866 = vsyncpa [#allocation10], 1
    %1867 = vsyncpa [#allocation13], 1
    %1868 = vsyncpa [#allocation16], 1
    %1869 = vsyncpa [#allocation19], 1
    %1870 = vsyncpa [#allocation22], 1
    %1871 = vsyncpa [#allocation8], 1

</llo_original>
